<compile_context>
chip_gen: v7x
topology: tpu7x:2x2x1
jax: 0.10.0
libtpu: 0.0.40
codegen_flags: <defaults>
</compile_context>

<pallas_src>
import math
import functools

import jax
import jax.numpy as jnp
from jax.experimental import pallas as pl
from jax.experimental.pallas import tpu as pltpu


# ---------------------------------------------------------------------------
# In-kernel helpers (traced inside the Pallas bodies)
# ---------------------------------------------------------------------------
def _ln(x, g, b, eps=1e-5):
    mean = jnp.mean(x, axis=-1, keepdims=True)
    var = jnp.mean(jnp.square(x - mean), axis=-1, keepdims=True)
    return (x - mean) * jax.lax.rsqrt(var + eps) * g + b


# ---------------------------------------------------------------------------
# Fused GPT trunk kernel: grid = (B, n_layer), activation resident in out block
# ---------------------------------------------------------------------------
def _gpt_kernel(x_ref, wte_w_ref, wte_b_ref, wpe_ref,
                ln1_g_ref, ln1_b_ref, attn_w_ref, attn_b_ref,
                proj_w_ref, proj_b_ref, ln2_g_ref, ln2_b_ref,
                fc_w_ref, fc_b_ref, mproj_w_ref, mproj_b_ref,
                h_ref, *, n_head):
    layer = pl.program_id(1)
    S, E = h_ref.shape[1], h_ref.shape[2]
    Dh = E // n_head
    scale = 1.0 / math.sqrt(Dh)

    # --- token embedding + positional embedding, only at the first layer ---
    @pl.when(layer == 0)
    def _():
        tok = jnp.dot(x_ref[0].astype(jnp.bfloat16), wte_w_ref[...],
                      preferred_element_type=jnp.float32)
        h_ref[0] = tok + wte_b_ref[...] + wpe_ref[...]
        # transformer.drop (p=0.1) is a no-op at inference.

    h = h_ref[0]                                          # (S, E) f32, VMEM-resident

    # --- attention block: h = h + c_proj(attn(ln_1(h))) ---
    a = _ln(h, ln1_g_ref[0], ln1_b_ref[0])
    qkv = jnp.dot(a.astype(jnp.bfloat16), attn_w_ref[0],
                  preferred_element_type=jnp.float32) + attn_b_ref[0]   # (S, 3E)
    q = qkv[:, :E]
    k = qkv[:, E:2 * E]
    v = qkv[:, 2 * E:3 * E]

    # causal mask built once per kernel body (shared by all heads)
    row = jax.lax.broadcasted_iota(jnp.int32, (S, S), 0)
    col = jax.lax.broadcasted_iota(jnp.int32, (S, S), 1)
    causal = col <= row

    heads = []
    for hi in range(n_head):                              # static unroll; all heads on-chip
        sl = slice(hi * Dh, (hi + 1) * Dh)
        qh = q[:, sl].astype(jnp.bfloat16)
        kh = k[:, sl].astype(jnp.bfloat16)
        vh = v[:, sl].astype(jnp.bfloat16)
        att = jax.lax.dot_general(qh, kh, (((1,), (1,)), ((), ())),
                                  preferred_element_type=jnp.float32) * scale
        att = jnp.where(causal, att, -1e30)
        att = jax.nn.softmax(att, axis=-1)                # f32 softmax
        heads.append(jnp.dot(att.astype(jnp.bfloat16), vh,
                             preferred_element_type=jnp.float32))
    o = jnp.concatenate(heads, axis=-1)                   # (S, E)
    h = h + jnp.dot(o.astype(jnp.bfloat16), proj_w_ref[0],
                    preferred_element_type=jnp.float32) + proj_b_ref[0]

    # --- MLP block: h = h + c_proj(gelu(c_fc(ln_2(h)))) ---
    m = _ln(h, ln2_g_ref[0], ln2_b_ref[0])
    m = jnp.dot(m.astype(jnp.bfloat16), fc_w_ref[0],
                preferred_element_type=jnp.float32) + fc_b_ref[0]
    # TODO(synk): minGPT uses the tanh GELU; PyTorch nn.GELU() default is exact erf.
    m = jax.nn.gelu(m, approximate=True)
    m = jnp.dot(m.astype(jnp.bfloat16), mproj_w_ref[0],
                preferred_element_type=jnp.float32) + mproj_b_ref[0]
    h_ref[0] = h + m


def gpt_forward(gp, x, n_head):
    """x: (B, S, D) tokens -> (B, S, E) hidden states (pre ln_f / lm_head)."""
    B, S, D = x.shape
    E = gp["wte_b"].shape[-1]
    n_layer = gp["attn_w"].shape[0]

    S_pad = max(8, -(-S // 8) * 8)          # pad rows to a multiple of 8 sublanes
    assert S_pad <= gp["wpe"].shape[0], "sequence longer than block_size"
    x_pad = jnp.pad(x, ((0, 0), (0, S_pad - S), (0, 0)))
    wpe = gp["wpe"][:S_pad]

    const2 = lambda b, l: (0, 0)
    batch3 = lambda b, l: (b, 0, 0)
    layer3 = lambda b, l: (l, 0, 0)

    in_specs = [
        pl.BlockSpec((1, S_pad, D), batch3),      # x tokens (per batch)
        pl.BlockSpec((D, E), const2),             # wte_w
        pl.BlockSpec((1, E), const2),             # wte_b
        pl.BlockSpec((S_pad, E), const2),         # wpe
        pl.BlockSpec((1, 1, E), layer3),          # ln1_g
        pl.BlockSpec((1, 1, E), layer3),          # ln1_b
        pl.BlockSpec((1, E, 3 * E), layer3),      # attn_w
        pl.BlockSpec((1, 1, 3 * E), layer3),      # attn_b
        pl.BlockSpec((1, E, E), layer3),          # proj_w
        pl.BlockSpec((1, 1, E), layer3),          # proj_b
        pl.BlockSpec((1, 1, E), layer3),          # ln2_g
        pl.BlockSpec((1, 1, E), layer3),          # ln2_b
        pl.BlockSpec((1, E, 4 * E), layer3),      # fc_w
        pl.BlockSpec((1, 1, 4 * E), layer3),      # fc_b
        pl.BlockSpec((1, 4 * E, E), layer3),      # mproj_w
        pl.BlockSpec((1, 1, E), layer3),          # mproj_b
    ]

    h = pl.pallas_call(
        functools.partial(_gpt_kernel, n_head=n_head),
        grid=(B, n_layer),
        in_specs=in_specs,
        out_specs=pl.BlockSpec((1, S_pad, E), batch3),   # revisited across layer axis
        out_shape=jax.ShapeDtypeStruct((B, S_pad, E), jnp.float32),
        compiler_params=pltpu.CompilerParams(
            dimension_semantics=("parallel", "arbitrary")),
    )(x_pad, gp["wte_w"], gp["wte_b"], wpe,
      gp["ln1_g"], gp["ln1_b"], gp["attn_w"], gp["attn_b"],
      gp["proj_w"], gp["proj_b"], gp["ln2_g"], gp["ln2_b"],
      gp["fc_w"], gp["fc_b"], gp["mproj_w"], gp["mproj_b"])
    return h[:, :S]


# ---------------------------------------------------------------------------
# Fused head kernel: ln_f -> lm_head (no bias) -> Linear+ReLU -> Linear+ReLU
#                    -> Linear -> Tanh        (single pallas_call)
# ---------------------------------------------------------------------------
def _head_kernel(f_ref, lnf_g_ref, lnf_b_ref, lm_w_ref,
                 w1_ref, b1_ref, w2_ref, b2_ref, w3_ref, b3_ref, o_ref):
    f = _ln(f_ref[...], lnf_g_ref[...], lnf_b_ref[...])
    f = jnp.dot(f.astype(jnp.bfloat16), lm_w_ref[...],
                preferred_element_type=jnp.float32)          # lm_head (bias=False)
    f = jnp.maximum(jnp.dot(f.astype(jnp.bfloat16), w1_ref[...],
                            preferred_element_type=jnp.float32) + b1_ref[...], 0.0)
    f = jnp.maximum(jnp.dot(f.astype(jnp.bfloat16), w2_ref[...],
                            preferred_element_type=jnp.float32) + b2_ref[...], 0.0)
    o_ref[...] = jnp.tanh(jnp.dot(f.astype(jnp.bfloat16), w3_ref[...],
                                  preferred_element_type=jnp.float32) + b3_ref[...])


def head_forward(gp, hp, feats):
    """feats: (M, E) action-token hidden states -> (M, act_dim) tanh actions."""
    M, _ = feats.shape
    act_dim = hp["w3"].shape[1]
    M_pad = max(8, -(-M // 8) * 8)
    f_pad = jnp.pad(feats, ((0, M_pad - M), (0, 0)))

    vmem = pl.BlockSpec(memory_space=pltpu.MemorySpace.VMEM)
    out = pl.pallas_call(
        _head_kernel,
        out_shape=jax.ShapeDtypeStruct((M_pad, act_dim), jnp.float32),
        in_specs=[vmem] * 10,
        out_specs=vmem,
    )(f_pad, gp["lnf_g"], gp["lnf_b"], gp["lm_w"],
      hp["w1"], hp["b1"], hp["w2"], hp["b2"], hp["w3"], hp["b3"])
    return out[:M]


# ---------------------------------------------------------------------------
# Parameter init (deterministic, synthetic — shapes follow the PyTorch __init__;
# layer params stacked along a leading n_layer axis, matmul weights in bf16)
# ---------------------------------------------------------------------------
def init_params(key, repr_dim, hidden_dim, act_dim, n_layer=8, n_head=4, block_size=65):
    E = hidden_dim
    keys = jax.random.split(key, 16)
    ki = iter(keys)

    def w(shape, dtype=jnp.bfloat16, scale=0.02):
        return (scale * jax.random.normal(next(ki), shape, dtype=jnp.float32)).astype(dtype)

    zeros = lambda s: jnp.zeros(s, jnp.float32)
    ones = lambda s: jnp.ones(s, jnp.float32)

    gpt = dict(
        wte_w=w((repr_dim, E)), wte_b=zeros((1, E)),
        wpe=w((block_size, E), dtype=jnp.float32),
        ln1_g=ones((n_layer, 1, E)), ln1_b=zeros((n_layer, 1, E)),
        attn_w=w((n_layer, E, 3 * E)), attn_b=zeros((n_layer, 1, 3 * E)),
        proj_w=w((n_layer, E, E)), proj_b=zeros((n_layer, 1, E)),
        ln2_g=ones((n_layer, 1, E)), ln2_b=zeros((n_layer, 1, E)),
        fc_w=w((n_layer, E, 4 * E)), fc_b=zeros((n_layer, 1, 4 * E)),
        mproj_w=w((n_layer, 4 * E, E)), mproj_b=zeros((n_layer, 1, E)),
        lnf_g=ones((1, E)), lnf_b=zeros((1, E)),
        lm_w=w((E, hidden_dim)),                      # lm_head bias=False
    )
    head = dict(                                      # DeterministicHead sizes [h, h, h, act]
        w1=w((hidden_dim, hidden_dim)), b1=zeros((1, hidden_dim)),
        w2=w((hidden_dim, hidden_dim)), b2=zeros((1, hidden_dim)),
        w3=w((hidden_dim, act_dim)), b3=zeros((1, act_dim)),
    )
    return dict(
        action_token=jax.random.normal(next(ki), (1, 1, 1, repr_dim), dtype=jnp.float32),
        gpt=gpt,
        head=head,
    )


# ---------------------------------------------------------------------------
# Actor forward (token arrangement + position selection is plain-JAX glue)
# ---------------------------------------------------------------------------
def actor_forward(params, obs, stddev, *, num_prompt_feats,
                  num_feat_per_step=1, n_head=4):
    B, T, D = obs.shape

    # token arrangement: [prompt | (obs feats, action token) per step]
    prompt = obs[:, :num_prompt_feats]
    rest = obs[:, num_prompt_feats:]
    n_steps = rest.shape[1] // num_feat_per_step
    rest = rest.reshape(B, n_steps, num_feat_per_step, D)
    atok = jnp.broadcast_to(params["action_token"], (B, n_steps, 1, D))
    x = jnp.concatenate([rest, atok], axis=-2).reshape(B, -1, D)
    x = jnp.concatenate([prompt, x], axis=1)                 # (B, S, D)

    h = gpt_forward(params["gpt"], x, n_head)                # (B, S, E)

    # features at action-token positions
    fps = num_feat_per_step + 1
    feats = h[:, num_prompt_feats:]
    feats = feats[:, fps - 1::fps]                           # (B, n_steps, E)
    E = feats.shape[-1]

    mu = head_forward(params["gpt"], params["head"], feats.reshape(B * n_steps, E))
    act_dim = mu.shape[-1]
    # TODO(synk): DeterministicHead wraps mu in TruncatedNormal(mu, stddev); a
    # distribution object has no Pallas equivalent — we return its mean (mu).
    del stddev
    return mu.reshape(B, n_steps, act_dim)


# ---------------------------------------------------------------------------
if __name__ == "__main__":
    B = 2
    repr_dim = 32          # D
    hidden_dim = 32        # n_embd / GPT output_dim
    act_dim = 8
    num_feat_per_step = 1
    num_prompt_feats = 1
    n_head = 4
    T = num_prompt_feats + 4 * num_feat_per_step   # 1 prompt feat + 4 obs steps

    key = jax.random.PRNGKey(0)
    pkey, okey = jax.random.split(key)
    params = init_params(pkey, repr_dim, hidden_dim, act_dim,
                         n_layer=8, n_head=n_head, block_size=65)
    obs = jax.random.normal(okey, (B, T, repr_dim), dtype=jnp.float32)
    stddev = 0.1

    fwd = jax.jit(functools.partial(actor_forward,
                                    num_prompt_feats=num_prompt_feats,
                                    num_feat_per_step=num_feat_per_step,
                                    n_head=n_head))
    out = fwd(params, obs, stddev)
    out = jax.block_until_ready(out)
    assert out.shape == (B, 4, act_dim), out.shape
    assert bool(jnp.all(jnp.isfinite(out)))
    print("KERNEL_OK")
</pallas_src>

<mosaic_0001>
module attributes {stable_mosaic.version = 11 : i64} {
  func.func @_head_kernel(%arg0: memref<8x32xf32, #tpu.memory_space<vmem>>, %arg1: memref<1x32xf32, #tpu.memory_space<vmem>>, %arg2: memref<1x32xf32, #tpu.memory_space<vmem>>, %arg3: memref<32x32xbf16, #tpu.memory_space<vmem>>, %arg4: memref<32x32xbf16, #tpu.memory_space<vmem>>, %arg5: memref<1x32xf32, #tpu.memory_space<vmem>>, %arg6: memref<32x32xbf16, #tpu.memory_space<vmem>>, %arg7: memref<1x32xf32, #tpu.memory_space<vmem>>, %arg8: memref<32x8xbf16, #tpu.memory_space<vmem>>, %arg9: memref<1x8xf32, #tpu.memory_space<vmem>>, %arg10: memref<8x8xf32, #tpu.memory_space<vmem>>) attributes {dimension_semantics = [], scalar_prefetch = 0 : i64, scratch_operands = 0 : i64, tpu.core_type = #tpu.core_type<tc>} {
    %c0 = arith.constant 0 : index
    %c0_0 = arith.constant 0 : index
    %0 = vector.load %arg0[%c0, %c0_0] : memref<8x32xf32, #tpu.memory_space<vmem>>, vector<8x32xf32>
    %c0_1 = arith.constant 0 : index
    %c0_2 = arith.constant 0 : index
    %1 = vector.load %arg1[%c0_1, %c0_2] : memref<1x32xf32, #tpu.memory_space<vmem>>, vector<1x32xf32>
    %c0_3 = arith.constant 0 : index
    %c0_4 = arith.constant 0 : index
    %2 = vector.load %arg2[%c0_3, %c0_4] : memref<1x32xf32, #tpu.memory_space<vmem>>, vector<1x32xf32>
    %cst = arith.constant dense<0.000000e+00> : vector<8xf32>
    %3 = vector.multi_reduction <add>, %0, %cst [1] : vector<8x32xf32> to vector<8xf32>
    %4 = vector.shape_cast %3 : vector<8xf32> to vector<8x1xf32>
    %cst_5 = arith.constant 3.200000e+01 : f32
    %5 = vector.broadcast %cst_5 : f32 to vector<8x1xf32>
    %6 = arith.divf %4, %5 : vector<8x1xf32>
    %7 = vector.broadcast %6 : vector<8x1xf32> to vector<8x32xf32>
    %8 = arith.subf %0, %7 : vector<8x32xf32>
    %9 = arith.mulf %8, %8 : vector<8x32xf32>
    %cst_6 = arith.constant dense<0.000000e+00> : vector<8xf32>
    %10 = vector.multi_reduction <add>, %9, %cst_6 [1] : vector<8x32xf32> to vector<8xf32>
    %11 = vector.shape_cast %10 : vector<8xf32> to vector<8x1xf32>
    %cst_7 = arith.constant 3.200000e+01 : f32
    %12 = vector.broadcast %cst_7 : f32 to vector<8x1xf32>
    %13 = arith.divf %11, %12 : vector<8x1xf32>
    %14 = vector.broadcast %6 : vector<8x1xf32> to vector<8x32xf32>
    %15 = arith.subf %0, %14 : vector<8x32xf32>
    %cst_8 = arith.constant 9.99999974E-6 : f32
    %16 = vector.broadcast %cst_8 : f32 to vector<8x1xf32>
    %17 = arith.addf %13, %16 : vector<8x1xf32>
    %18 = math.rsqrt %17 : vector<8x1xf32>
    %19 = vector.broadcast %18 : vector<8x1xf32> to vector<8x32xf32>
    %20 = arith.mulf %15, %19 : vector<8x32xf32>
    %21 = vector.broadcast %1 : vector<1x32xf32> to vector<8x32xf32>
    %22 = arith.mulf %20, %21 : vector<8x32xf32>
    %23 = vector.broadcast %2 : vector<1x32xf32> to vector<8x32xf32>
    %24 = arith.addf %22, %23 : vector<8x32xf32>
    %25 = arith.truncf %24 : vector<8x32xf32> to vector<8x32xbf16>
    %c0_9 = arith.constant 0 : index
    %c0_10 = arith.constant 0 : index
    %26 = vector.load %arg3[%c0_9, %c0_10] : memref<32x32xbf16, #tpu.memory_space<vmem>>, vector<32x32xbf16>
    %cst_11 = arith.constant dense<0.000000e+00> : vector<8x32xf32>
    %27 = tpu.matmul %25, %26, %cst_11 {dimension_numbers = #tpu.dot_dimension_numbers<[1], [0], [0], [1], [0, 0, 1, 1], [], []>} : vector<8x32xbf16>, vector<32x32xbf16>, vector<8x32xf32> -> vector<8x32xf32>
    %28 = arith.truncf %27 : vector<8x32xf32> to vector<8x32xbf16>
    %c0_12 = arith.constant 0 : index
    %c0_13 = arith.constant 0 : index
    %29 = vector.load %arg4[%c0_12, %c0_13] : memref<32x32xbf16, #tpu.memory_space<vmem>>, vector<32x32xbf16>
    %cst_14 = arith.constant dense<0.000000e+00> : vector<8x32xf32>
    %30 = tpu.matmul %28, %29, %cst_14 {dimension_numbers = #tpu.dot_dimension_numbers<[1], [0], [0], [1], [0, 0, 1, 1], [], []>} : vector<8x32xbf16>, vector<32x32xbf16>, vector<8x32xf32> -> vector<8x32xf32>
    %c0_15 = arith.constant 0 : index
    %c0_16 = arith.constant 0 : index
    %31 = vector.load %arg5[%c0_15, %c0_16] : memref<1x32xf32, #tpu.memory_space<vmem>>, vector<1x32xf32>
    %32 = vector.broadcast %31 : vector<1x32xf32> to vector<8x32xf32>
    %33 = arith.addf %30, %32 : vector<8x32xf32>
    %cst_17 = arith.constant 0.000000e+00 : f32
    %34 = vector.broadcast %cst_17 : f32 to vector<8x32xf32>
    %35 = arith.maximumf %33, %34 : vector<8x32xf32>
    %36 = arith.truncf %35 : vector<8x32xf32> to vector<8x32xbf16>
    %c0_18 = arith.constant 0 : index
    %c0_19 = arith.constant 0 : index
    %37 = vector.load %arg6[%c0_18, %c0_19] : memref<32x32xbf16, #tpu.memory_space<vmem>>, vector<32x32xbf16>
    %cst_20 = arith.constant dense<0.000000e+00> : vector<8x32xf32>
    %38 = tpu.matmul %36, %37, %cst_20 {dimension_numbers = #tpu.dot_dimension_numbers<[1], [0], [0], [1], [0, 0, 1, 1], [], []>} : vector<8x32xbf16>, vector<32x32xbf16>, vector<8x32xf32> -> vector<8x32xf32>
    %c0_21 = arith.constant 0 : index
    %c0_22 = arith.constant 0 : index
    %39 = vector.load %arg7[%c0_21, %c0_22] : memref<1x32xf32, #tpu.memory_space<vmem>>, vector<1x32xf32>
    %40 = vector.broadcast %39 : vector<1x32xf32> to vector<8x32xf32>
    %41 = arith.addf %38, %40 : vector<8x32xf32>
    %cst_23 = arith.constant 0.000000e+00 : f32
    %42 = vector.broadcast %cst_23 : f32 to vector<8x32xf32>
    %43 = arith.maximumf %41, %42 : vector<8x32xf32>
    %44 = arith.truncf %43 : vector<8x32xf32> to vector<8x32xbf16>
    %c0_24 = arith.constant 0 : index
    %c0_25 = arith.constant 0 : index
    %45 = vector.load %arg8[%c0_24, %c0_25] : memref<32x8xbf16, #tpu.memory_space<vmem>>, vector<32x8xbf16>
    %cst_26 = arith.constant dense<0.000000e+00> : vector<8x8xf32>
    %46 = tpu.matmul %44, %45, %cst_26 {dimension_numbers = #tpu.dot_dimension_numbers<[1], [0], [0], [1], [0, 0, 1, 1], [], []>} : vector<8x32xbf16>, vector<32x8xbf16>, vector<8x8xf32> -> vector<8x8xf32>
    %c0_27 = arith.constant 0 : index
    %c0_28 = arith.constant 0 : index
    %47 = vector.load %arg9[%c0_27, %c0_28] : memref<1x8xf32, #tpu.memory_space<vmem>>, vector<1x8xf32>
    %48 = vector.broadcast %47 : vector<1x8xf32> to vector<8x8xf32>
    %49 = arith.addf %46, %48 : vector<8x8xf32>
    %50 = math.tanh %49 : vector<8x8xf32>
    %c0_29 = arith.constant 0 : index
    %c0_30 = arith.constant 0 : index
    %51 = vector.load %arg10[%c0_29, %c0_30] : memref<8x8xf32, #tpu.memory_space<vmem>>, vector<8x8xf32>
    tpu.vector_store %arg10[%c0_29, %c0_30], %50 {strides = array<i32>} : memref<8x8xf32, #tpu.memory_space<vmem>>, vector<8x8xf32>,
    return
  }
}

module attributes {stable_mosaic.version = 11 : i64} {
  func.func @_gpt_kernel(%arg0: i32, %arg1: i32, %arg2: memref<1x16x32xf32, #tpu.memory_space<vmem>>, %arg3: memref<32x32xbf16, #tpu.memory_space<vmem>>, %arg4: memref<1x32xf32, #tpu.memory_space<vmem>>, %arg5: memref<16x32xf32, #tpu.memory_space<vmem>>, %arg6: memref<1x1x32xf32, #tpu.memory_space<vmem>>, %arg7: memref<1x1x32xf32, #tpu.memory_space<vmem>>, %arg8: memref<1x32x96xbf16, #tpu.memory_space<vmem>>, %arg9: memref<1x1x96xf32, #tpu.memory_space<vmem>>, %arg10: memref<1x32x32xbf16, #tpu.memory_space<vmem>>, %arg11: memref<1x1x32xf32, #tpu.memory_space<vmem>>, %arg12: memref<1x1x32xf32, #tpu.memory_space<vmem>>, %arg13: memref<1x1x32xf32, #tpu.memory_space<vmem>>, %arg14: memref<1x32x128xbf16, #tpu.memory_space<vmem>>, %arg15: memref<1x1x128xf32, #tpu.memory_space<vmem>>, %arg16: memref<1x128x32xbf16, #tpu.memory_space<vmem>>, %arg17: memref<1x1x32xf32, #tpu.memory_space<vmem>>, %arg18: memref<1x16x32xf32, #tpu.memory_space<vmem>>) attributes {dimension_semantics = [#tpu.dimension_semantics<parallel>, #tpu.dimension_semantics<arbitrary>], iteration_bounds = array<i64: 2, 8>, scalar_prefetch = 0 : i64, scratch_operands = 0 : i64, tpu.core_type = #tpu.core_type<tc>, window_params = [{transform_indices = @transform_0, window_bounds = array<i64: 1, 16, 32>}, {pipeline_mode = #tpu.pipeline_mode<synchronous>, transform_indices = @transform_1, window_bounds = array<i64: 32, 32>}, {pipeline_mode = #tpu.pipeline_mode<synchronous>, transform_indices = @transform_2, window_bounds = array<i64: 1, 32>}, {pipeline_mode = #tpu.pipeline_mode<synchronous>, transform_indices = @transform_3, window_bounds = array<i64: 16, 32>}, {transform_indices = @transform_4, window_bounds = array<i64: 1, 1, 32>}, {transform_indices = @transform_5, window_bounds = array<i64: 1, 1, 32>}, {transform_indices = @transform_6, window_bounds = array<i64: 1, 32, 96>}, {transform_indices = @transform_7, window_bounds = array<i64: 1, 1, 96>}, {transform_indices = @transform_8, window_bounds = array<i64: 1, 32, 32>}, {transform_indices = @transform_9, window_bounds = array<i64: 1, 1, 32>}, {transform_indices = @transform_10, window_bounds = array<i64: 1, 1, 32>}, {transform_indices = @transform_11, window_bounds = array<i64: 1, 1, 32>}, {transform_indices = @transform_12, window_bounds = array<i64: 1, 32, 128>}, {transform_indices = @transform_13, window_bounds = array<i64: 1, 1, 128>}, {transform_indices = @transform_14, window_bounds = array<i64: 1, 128, 32>}, {transform_indices = @transform_15, window_bounds = array<i64: 1, 1, 32>}, {transform_indices = @transform_16, window_bounds = array<i64: 1, 16, 32>}]} {
    %c0_i32 = arith.constant 0 : i32
    %0 = arith.cmpi eq, %arg1, %c0_i32 : i32
    %1 = arith.extui %0 : i1 to i32
    %c0_i32_0 = arith.constant 0 : i32
    %2 = arith.cmpi ne, %1, %c0_i32_0 : i32
    scf.if %2 {
      %c0_87 = arith.constant 0 : index
      %c0_88 = arith.constant 0 : index
      %c0_89 = arith.constant 0 : index
      %210 = vector.load %arg2[%c0_87, %c0_88, %c0_89] : memref<1x16x32xf32, #tpu.memory_space<vmem>>, vector<1x16x32xf32>
      %211 = vector.shape_cast %210 : vector<1x16x32xf32> to vector<16x32xf32>
      %212 = arith.truncf %211 : vector<16x32xf32> to vector<16x32xbf16>
      %c0_90 = arith.constant 0 : index
      %c0_91 = arith.constant 0 : index
      %213 = vector.load %arg3[%c0_90, %c0_91] : memref<32x32xbf16, #tpu.memory_space<vmem>>, vector<32x32xbf16>
      %cst_92 = arith.constant dense<0.000000e+00> : vector<16x32xf32>
      %214 = tpu.matmul %212, %213, %cst_92 {dimension_numbers = #tpu.dot_dimension_numbers<[1], [0], [0], [1], [0, 0, 1, 1], [], []>} : vector<16x32xbf16>, vector<32x32xbf16>, vector<16x32xf32> -> vector<16x32xf32>
      %c0_93 = arith.constant 0 : index
      %c0_94 = arith.constant 0 : index
      %215 = vector.load %arg4[%c0_93, %c0_94] : memref<1x32xf32, #tpu.memory_space<vmem>>, vector<1x32xf32>
      %216 = vector.broadcast %215 : vector<1x32xf32> to vector<16x32xf32>
      %217 = arith.addf %214, %216 : vector<16x32xf32>
      %c0_95 = arith.constant 0 : index
      %c0_96 = arith.constant 0 : index
      %218 = vector.load %arg5[%c0_95, %c0_96] : memref<16x32xf32, #tpu.memory_space<vmem>>, vector<16x32xf32>
      %219 = arith.addf %217, %218 : vector<16x32xf32>
      %c0_97 = arith.constant 0 : index
      %c0_98 = arith.constant 0 : index
      %c0_99 = arith.constant 0 : index
      %220 = vector.load %arg18[%c0_97, %c0_98, %c0_99] : memref<1x16x32xf32, #tpu.memory_space<vmem>>, vector<1x16x32xf32>
      %221 = vector.shape_cast %220 : vector<1x16x32xf32> to vector<16x32xf32>
      %222 = vector.shape_cast %219 : vector<16x32xf32> to vector<1x16x32xf32>
      tpu.vector_store %arg18[%c0_97, %c0_98, %c0_99], %222 {strides = array<i32>} : memref<1x16x32xf32, #tpu.memory_space<vmem>>, vector<1x16x32xf32>,
    } else {
    }
    %c0 = arith.constant 0 : index
    %c0_1 = arith.constant 0 : index
    %c0_2 = arith.constant 0 : index
    %3 = vector.load %arg18[%c0, %c0_1, %c0_2] : memref<1x16x32xf32, #tpu.memory_space<vmem>>, vector<1x16x32xf32>
    %4 = vector.shape_cast %3 : vector<1x16x32xf32> to vector<16x32xf32>
    %c0_3 = arith.constant 0 : index
    %c0_4 = arith.constant 0 : index
    %c0_5 = arith.constant 0 : index
    %5 = vector.load %arg6[%c0_3, %c0_4, %c0_5] : memref<1x1x32xf32, #tpu.memory_space<vmem>>, vector<1x1x32xf32>
    %6 = vector.shape_cast %5 : vector<1x1x32xf32> to vector<1x32xf32>
    %c0_6 = arith.constant 0 : index
    %c0_7 = arith.constant 0 : index
    %c0_8 = arith.constant 0 : index
    %7 = vector.load %arg7[%c0_6, %c0_7, %c0_8] : memref<1x1x32xf32, #tpu.memory_space<vmem>>, vector<1x1x32xf32>
    %8 = vector.shape_cast %7 : vector<1x1x32xf32> to vector<1x32xf32>
    %cst = arith.constant dense<0.000000e+00> : vector<16xf32>
    %9 = vector.multi_reduction <add>, %4, %cst [1] : vector<16x32xf32> to vector<16xf32>
    %10 = vector.shape_cast %9 : vector<16xf32> to vector<16x1xf32>
    %cst_9 = arith.constant 3.200000e+01 : f32
    %11 = vector.broadcast %cst_9 : f32 to vector<16x1xf32>
    %12 = arith.divf %10, %11 : vector<16x1xf32>
    %13 = vector.broadcast %12 : vector<16x1xf32> to vector<16x32xf32>
    %14 = arith.subf %4, %13 : vector<16x32xf32>
    %15 = arith.mulf %14, %14 : vector<16x32xf32>
    %cst_10 = arith.constant dense<0.000000e+00> : vector<16xf32>
    %16 = vector.multi_reduction <add>, %15, %cst_10 [1] : vector<16x32xf32> to vector<16xf32>
    %17 = vector.shape_cast %16 : vector<16xf32> to vector<16x1xf32>
    %cst_11 = arith.constant 3.200000e+01 : f32
    %18 = vector.broadcast %cst_11 : f32 to vector<16x1xf32>
    %19 = arith.divf %17, %18 : vector<16x1xf32>
    %20 = vector.broadcast %12 : vector<16x1xf32> to vector<16x32xf32>
    %21 = arith.subf %4, %20 : vector<16x32xf32>
    %cst_12 = arith.constant 9.99999974E-6 : f32
    %22 = vector.broadcast %cst_12 : f32 to vector<16x1xf32>
    %23 = arith.addf %19, %22 : vector<16x1xf32>
    %24 = math.rsqrt %23 : vector<16x1xf32>
    %25 = vector.broadcast %24 : vector<16x1xf32> to vector<16x32xf32>
    %26 = arith.mulf %21, %25 : vector<16x32xf32>
    %27 = vector.broadcast %6 : vector<1x32xf32> to vector<16x32xf32>
    %28 = arith.mulf %26, %27 : vector<16x32xf32>
    %29 = vector.broadcast %8 : vector<1x32xf32> to vector<16x32xf32>
    %30 = arith.addf %28, %29 : vector<16x32xf32>
    %31 = arith.truncf %30 : vector<16x32xf32> to vector<16x32xbf16>
    %c0_13 = arith.constant 0 : index
    %c0_14 = arith.constant 0 : index
    %c0_15 = arith.constant 0 : index
    %32 = vector.load %arg8[%c0_13, %c0_14, %c0_15] : memref<1x32x96xbf16, #tpu.memory_space<vmem>>, vector<1x32x96xbf16>
    %33 = vector.shape_cast %32 : vector<1x32x96xbf16> to vector<32x96xbf16>
    %cst_16 = arith.constant dense<0.000000e+00> : vector<16x96xf32>
    %34 = tpu.matmul %31, %33, %cst_16 {dimension_numbers = #tpu.dot_dimension_numbers<[1], [0], [0], [1], [0, 0, 1, 1], [], []>} : vector<16x32xbf16>, vector<32x96xbf16>, vector<16x96xf32> -> vector<16x96xf32>
    %c0_17 = arith.constant 0 : index
    %c0_18 = arith.constant 0 : index
    %c0_19 = arith.constant 0 : index
    %35 = vector.load %arg9[%c0_17, %c0_18, %c0_19] : memref<1x1x96xf32, #tpu.memory_space<vmem>>, vector<1x1x96xf32>
    %36 = vector.shape_cast %35 : vector<1x1x96xf32> to vector<1x96xf32>
    %37 = vector.broadcast %36 : vector<1x96xf32> to vector<16x96xf32>
    %38 = arith.addf %34, %37 : vector<16x96xf32>
    %39 = vector.extract_strided_slice %38 {offsets = [0, 0], sizes = [16, 32], strides = [1, 1]} : vector<16x96xf32> to vector<16x32xf32>
    %40 = vector.extract_strided_slice %38 {offsets = [0, 32], sizes = [16, 32], strides = [1, 1]} : vector<16x96xf32> to vector<16x32xf32>
    %41 = vector.extract_strided_slice %38 {offsets = [0, 64], sizes = [16, 32], strides = [1, 1]} : vector<16x96xf32> to vector<16x32xf32>
    %42 = tpu.iota {dimensions = array<i32: 0>} : vector<16x16xi32>
    %43 = tpu.iota {dimensions = array<i32: 1>} : vector<16x16xi32>
    %44 = arith.cmpi sle, %43, %42 : vector<16x16xi32>
    %45 = vector.extract_strided_slice %39 {offsets = [0, 0], sizes = [16, 8], strides = [1, 1]} : vector<16x32xf32> to vector<16x8xf32>
    %46 = arith.truncf %45 : vector<16x8xf32> to vector<16x8xbf16>
    %47 = vector.extract_strided_slice %40 {offsets = [0, 0], sizes = [16, 8], strides = [1, 1]} : vector<16x32xf32> to vector<16x8xf32>
    %48 = arith.truncf %47 : vector<16x8xf32> to vector<16x8xbf16>
    %49 = vector.extract_strided_slice %41 {offsets = [0, 0], sizes = [16, 8], strides = [1, 1]} : vector<16x32xf32> to vector<16x8xf32>
    %50 = arith.truncf %49 : vector<16x8xf32> to vector<16x8xbf16>
    %cst_20 = arith.constant dense<0.000000e+00> : vector<16x16xf32>
    %51 = tpu.matmul %46, %48, %cst_20 {dimension_numbers = #tpu.dot_dimension_numbers<[1], [1], [0], [0], [0, 0, 1, 0], [], []>} : vector<16x8xbf16>, vector<16x8xbf16>, vector<16x16xf32> -> vector<16x16xf32>
    %cst_21 = arith.constant 0.353553385 : f32
    %52 = vector.broadcast %cst_21 : f32 to vector<16x16xf32>
    %53 = arith.mulf %51, %52 : vector<16x16xf32>
    %cst_22 = arith.constant -1.000000e+30 : f32
    %54 = vector.broadcast %cst_22 : f32 to vector<16x16xf32>
    %55 = arith.select %44, %53, %54 : vector<16x16xi1>, vector<16x16xf32>
    %cst_23 = arith.constant dense<0xFF800000> : vector<16xf32>
    %56 = vector.multi_reduction <maximumf>, %55, %cst_23 [1] : vector<16x16xf32> to vector<16xf32>
    %cst_24 = arith.constant 0xFF800000 : f32
    %57 = vector.broadcast %cst_24 : f32 to vector<16xf32>
    %58 = arith.maximumf %57, %56 : vector<16xf32>
    %59 = vector.shape_cast %58 : vector<16xf32> to vector<16x1xf32>
    %60 = vector.broadcast %59 : vector<16x1xf32> to vector<16x16xf32>
    %61 = arith.subf %55, %60 : vector<16x16xf32>
    %62 = math.exp %61 : vector<16x16xf32>
    %cst_25 = arith.constant dense<0.000000e+00> : vector<16xf32>
    %63 = vector.multi_reduction <add>, %62, %cst_25 [1] : vector<16x16xf32> to vector<16xf32>
    %64 = vector.shape_cast %63 : vector<16xf32> to vector<16x1xf32>
    %65 = vector.broadcast %64 : vector<16x1xf32> to vector<16x16xf32>
    %66 = arith.divf %62, %65 : vector<16x16xf32>
    %67 = arith.truncf %66 : vector<16x16xf32> to vector<16x16xbf16>
    %cst_26 = arith.constant dense<0.000000e+00> : vector<16x8xf32>
    %68 = tpu.matmul %67, %50, %cst_26 {dimension_numbers = #tpu.dot_dimension_numbers<[1], [0], [0], [1], [0, 0, 1, 1], [], []>} : vector<16x16xbf16>, vector<16x8xbf16>, vector<16x8xf32> -> vector<16x8xf32>
    %69 = vector.extract_strided_slice %39 {offsets = [0, 8], sizes = [16, 8], strides = [1, 1]} : vector<16x32xf32> to vector<16x8xf32>
    %70 = arith.truncf %69 : vector<16x8xf32> to vector<16x8xbf16>
    %71 = vector.extract_strided_slice %40 {offsets = [0, 8], sizes = [16, 8], strides = [1, 1]} : vector<16x32xf32> to vector<16x8xf32>
    %72 = arith.truncf %71 : vector<16x8xf32> to vector<16x8xbf16>
    %73 = vector.extract_strided_slice %41 {offsets = [0, 8], sizes = [16, 8], strides = [1, 1]} : vector<16x32xf32> to vector<16x8xf32>
    %74 = arith.truncf %73 : vector<16x8xf32> to vector<16x8xbf16>
    %cst_27 = arith.constant dense<0.000000e+00> : vector<16x16xf32>
    %75 = tpu.matmul %70, %72, %cst_27 {dimension_numbers = #tpu.dot_dimension_numbers<[1], [1], [0], [0], [0, 0, 1, 0], [], []>} : vector<16x8xbf16>, vector<16x8xbf16>, vector<16x16xf32> -> vector<16x16xf32>
    %cst_28 = arith.constant 0.353553385 : f32
    %76 = vector.broadcast %cst_28 : f32 to vector<16x16xf32>
    %77 = arith.mulf %75, %76 : vector<16x16xf32>
    %cst_29 = arith.constant -1.000000e+30 : f32
    %78 = vector.broadcast %cst_29 : f32 to vector<16x16xf32>
    %79 = arith.select %44, %77, %78 : vector<16x16xi1>, vector<16x16xf32>
    %cst_30 = arith.constant dense<0xFF800000> : vector<16xf32>
    %80 = vector.multi_reduction <maximumf>, %79, %cst_30 [1] : vector<16x16xf32> to vector<16xf32>
    %cst_31 = arith.constant 0xFF800000 : f32
    %81 = vector.broadcast %cst_31 : f32 to vector<16xf32>
    %82 = arith.maximumf %81, %80 : vector<16xf32>
    %83 = vector.shape_cast %82 : vector<16xf32> to vector<16x1xf32>
    %84 = vector.broadcast %83 : vector<16x1xf32> to vector<16x16xf32>
    %85 = arith.subf %79, %84 : vector<16x16xf32>
    %86 = math.exp %85 : vector<16x16xf32>
    %cst_32 = arith.constant dense<0.000000e+00> : vector<16xf32>
    %87 = vector.multi_reduction <add>, %86, %cst_32 [1] : vector<16x16xf32> to vector<16xf32>
    %88 = vector.shape_cast %87 : vector<16xf32> to vector<16x1xf32>
    %89 = vector.broadcast %88 : vector<16x1xf32> to vector<16x16xf32>
    %90 = arith.divf %86, %89 : vector<16x16xf32>
    %91 = arith.truncf %90 : vector<16x16xf32> to vector<16x16xbf16>
    %cst_33 = arith.constant dense<0.000000e+00> : vector<16x8xf32>
    %92 = tpu.matmul %91, %74, %cst_33 {dimension_numbers = #tpu.dot_dimension_numbers<[1], [0], [0], [1], [0, 0, 1, 1], [], []>} : vector<16x16xbf16>, vector<16x8xbf16>, vector<16x8xf32> -> vector<16x8xf32>
    %93 = vector.extract_strided_slice %39 {offsets = [0, 16], sizes = [16, 8], strides = [1, 1]} : vector<16x32xf32> to vector<16x8xf32>
    %94 = arith.truncf %93 : vector<16x8xf32> to vector<16x8xbf16>
    %95 = vector.extract_strided_slice %40 {offsets = [0, 16], sizes = [16, 8], strides = [1, 1]} : vector<16x32xf32> to vector<16x8xf32>
    %96 = arith.truncf %95 : vector<16x8xf32> to vector<16x8xbf16>
    %97 = vector.extract_strided_slice %41 {offsets = [0, 16], sizes = [16, 8], strides = [1, 1]} : vector<16x32xf32> to vector<16x8xf32>
    %98 = arith.truncf %97 : vector<16x8xf32> to vector<16x8xbf16>
    %cst_34 = arith.constant dense<0.000000e+00> : vector<16x16xf32>
    %99 = tpu.matmul %94, %96, %cst_34 {dimension_numbers = #tpu.dot_dimension_numbers<[1], [1], [0], [0], [0, 0, 1, 0], [], []>} : vector<16x8xbf16>, vector<16x8xbf16>, vector<16x16xf32> -> vector<16x16xf32>
    %cst_35 = arith.constant 0.353553385 : f32
    %100 = vector.broadcast %cst_35 : f32 to vector<16x16xf32>
    %101 = arith.mulf %99, %100 : vector<16x16xf32>
    %cst_36 = arith.constant -1.000000e+30 : f32
    %102 = vector.broadcast %cst_36 : f32 to vector<16x16xf32>
    %103 = arith.select %44, %101, %102 : vector<16x16xi1>, vector<16x16xf32>
    %cst_37 = arith.constant dense<0xFF800000> : vector<16xf32>
    %104 = vector.multi_reduction <maximumf>, %103, %cst_37 [1] : vector<16x16xf32> to vector<16xf32>
    %cst_38 = arith.constant 0xFF800000 : f32
    %105 = vector.broadcast %cst_38 : f32 to vector<16xf32>
    %106 = arith.maximumf %105, %104 : vector<16xf32>
    %107 = vector.shape_cast %106 : vector<16xf32> to vector<16x1xf32>
    %108 = vector.broadcast %107 : vector<16x1xf32> to vector<16x16xf32>
    %109 = arith.subf %103, %108 : vector<16x16xf32>
    %110 = math.exp %109 : vector<16x16xf32>
    %cst_39 = arith.constant dense<0.000000e+00> : vector<16xf32>
    %111 = vector.multi_reduction <add>, %110, %cst_39 [1] : vector<16x16xf32> to vector<16xf32>
    %112 = vector.shape_cast %111 : vector<16xf32> to vector<16x1xf32>
    %113 = vector.broadcast %112 : vector<16x1xf32> to vector<16x16xf32>
    %114 = arith.divf %110, %113 : vector<16x16xf32>
    %115 = arith.truncf %114 : vector<16x16xf32> to vector<16x16xbf16>
    %cst_40 = arith.constant dense<0.000000e+00> : vector<16x8xf32>
    %116 = tpu.matmul %115, %98, %cst_40 {dimension_numbers = #tpu.dot_dimension_numbers<[1], [0], [0], [1], [0, 0, 1, 1], [], []>} : vector<16x16xbf16>, vector<16x8xbf16>, vector<16x8xf32> -> vector<16x8xf32>
    %117 = vector.extract_strided_slice %39 {offsets = [0, 24], sizes = [16, 8], strides = [1, 1]} : vector<16x32xf32> to vector<16x8xf32>
    %118 = arith.truncf %117 : vector<16x8xf32> to vector<16x8xbf16>
    %119 = vector.extract_strided_slice %40 {offsets = [0, 24], sizes = [16, 8], strides = [1, 1]} : vector<16x32xf32> to vector<16x8xf32>
    %120 = arith.truncf %119 : vector<16x8xf32> to vector<16x8xbf16>
    %121 = vector.extract_strided_slice %41 {offsets = [0, 24], sizes = [16, 8], strides = [1, 1]} : vector<16x32xf32> to vector<16x8xf32>
    %122 = arith.truncf %121 : vector<16x8xf32> to vector<16x8xbf16>
    %cst_41 = arith.constant dense<0.000000e+00> : vector<16x16xf32>
    %123 = tpu.matmul %118, %120, %cst_41 {dimension_numbers = #tpu.dot_dimension_numbers<[1], [1], [0], [0], [0, 0, 1, 0], [], []>} : vector<16x8xbf16>, vector<16x8xbf16>, vector<16x16xf32> -> vector<16x16xf32>
    %cst_42 = arith.constant 0.353553385 : f32
    %124 = vector.broadcast %cst_42 : f32 to vector<16x16xf32>
    %125 = arith.mulf %123, %124 : vector<16x16xf32>
    %cst_43 = arith.constant -1.000000e+30 : f32
    %126 = vector.broadcast %cst_43 : f32 to vector<16x16xf32>
    %127 = arith.select %44, %125, %126 : vector<16x16xi1>, vector<16x16xf32>
    %cst_44 = arith.constant dense<0xFF800000> : vector<16xf32>
    %128 = vector.multi_reduction <maximumf>, %127, %cst_44 [1] : vector<16x16xf32> to vector<16xf32>
    %cst_45 = arith.constant 0xFF800000 : f32
    %129 = vector.broadcast %cst_45 : f32 to vector<16xf32>
    %130 = arith.maximumf %129, %128 : vector<16xf32>
    %131 = vector.shape_cast %130 : vector<16xf32> to vector<16x1xf32>
    %132 = vector.broadcast %131 : vector<16x1xf32> to vector<16x16xf32>
    %133 = arith.subf %127, %132 : vector<16x16xf32>
    %134 = math.exp %133 : vector<16x16xf32>
    %cst_46 = arith.constant dense<0.000000e+00> : vector<16xf32>
    %135 = vector.multi_reduction <add>, %134, %cst_46 [1] : vector<16x16xf32> to vector<16xf32>
    %136 = vector.shape_cast %135 : vector<16xf32> to vector<16x1xf32>
    %137 = vector.broadcast %136 : vector<16x1xf32> to vector<16x16xf32>
    %138 = arith.divf %134, %137 : vector<16x16xf32>
    %139 = arith.truncf %138 : vector<16x16xf32> to vector<16x16xbf16>
    %cst_47 = arith.constant dense<0.000000e+00> : vector<16x8xf32>
    %140 = tpu.matmul %139, %122, %cst_47 {dimension_numbers = #tpu.dot_dimension_numbers<[1], [0], [0], [1], [0, 0, 1, 1], [], []>} : vector<16x16xbf16>, vector<16x8xbf16>, vector<16x8xf32> -> vector<16x8xf32>
    %141 = tpu.concatenate %68, %92, %116, %140 in 1 : vector<16x8xf32>, vector<16x8xf32>, vector<16x8xf32>, vector<16x8xf32> -> vector<16x32xf32>
    %142 = arith.truncf %141 : vector<16x32xf32> to vector<16x32xbf16>
    %c0_48 = arith.constant 0 : index
    %c0_49 = arith.constant 0 : index
    %c0_50 = arith.constant 0 : index
    %143 = vector.load %arg10[%c0_48, %c0_49, %c0_50] : memref<1x32x32xbf16, #tpu.memory_space<vmem>>, vector<1x32x32xbf16>
    %144 = vector.shape_cast %143 : vector<1x32x32xbf16> to vector<32x32xbf16>
    %cst_51 = arith.constant dense<0.000000e+00> : vector<16x32xf32>
    %145 = tpu.matmul %142, %144, %cst_51 {dimension_numbers = #tpu.dot_dimension_numbers<[1], [0], [0], [1], [0, 0, 1, 1], [], []>} : vector<16x32xbf16>, vector<32x32xbf16>, vector<16x32xf32> -> vector<16x32xf32>
    %146 = arith.addf %4, %145 : vector<16x32xf32>
    %c0_52 = arith.constant 0 : index
    %c0_53 = arith.constant 0 : index
    %c0_54 = arith.constant 0 : index
    %147 = vector.load %arg11[%c0_52, %c0_53, %c0_54] : memref<1x1x32xf32, #tpu.memory_space<vmem>>, vector<1x1x32xf32>
    %148 = vector.shape_cast %147 : vector<1x1x32xf32> to vector<1x32xf32>
    %149 = vector.broadcast %148 : vector<1x32xf32> to vector<16x32xf32>
    %150 = arith.addf %146, %149 : vector<16x32xf32>
    %c0_55 = arith.constant 0 : index
    %c0_56 = arith.constant 0 : index
    %c0_57 = arith.constant 0 : index
    %151 = vector.load %arg12[%c0_55, %c0_56, %c0_57] : memref<1x1x32xf32, #tpu.memory_space<vmem>>, vector<1x1x32xf32>
    %152 = vector.shape_cast %151 : vector<1x1x32xf32> to vector<1x32xf32>
    %c0_58 = arith.constant 0 : index
    %c0_59 = arith.constant 0 : index
    %c0_60 = arith.constant 0 : index
    %153 = vector.load %arg13[%c0_58, %c0_59, %c0_60] : memref<1x1x32xf32, #tpu.memory_space<vmem>>, vector<1x1x32xf32>
    %154 = vector.shape_cast %153 : vector<1x1x32xf32> to vector<1x32xf32>
    %cst_61 = arith.constant dense<0.000000e+00> : vector<16xf32>
    %155 = vector.multi_reduction <add>, %150, %cst_61 [1] : vector<16x32xf32> to vector<16xf32>
    %156 = vector.shape_cast %155 : vector<16xf32> to vector<16x1xf32>
    %cst_62 = arith.constant 3.200000e+01 : f32
    %157 = vector.broadcast %cst_62 : f32 to vector<16x1xf32>
    %158 = arith.divf %156, %157 : vector<16x1xf32>
    %159 = vector.broadcast %158 : vector<16x1xf32> to vector<16x32xf32>
    %160 = arith.subf %150, %159 : vector<16x32xf32>
    %161 = arith.mulf %160, %160 : vector<16x32xf32>
    %cst_63 = arith.constant dense<0.000000e+00> : vector<16xf32>
    %162 = vector.multi_reduction <add>, %161, %cst_63 [1] : vector<16x32xf32> to vector<16xf32>
    %163 = vector.shape_cast %162 : vector<16xf32> to vector<16x1xf32>
    %cst_64 = arith.constant 3.200000e+01 : f32
    %164 = vector.broadcast %cst_64 : f32 to vector<16x1xf32>
    %165 = arith.divf %163, %164 : vector<16x1xf32>
    %166 = vector.broadcast %158 : vector<16x1xf32> to vector<16x32xf32>
    %167 = arith.subf %150, %166 : vector<16x32xf32>
    %cst_65 = arith.constant 9.99999974E-6 : f32
    %168 = vector.broadcast %cst_65 : f32 to vector<16x1xf32>
    %169 = arith.addf %165, %168 : vector<16x1xf32>
    %170 = math.rsqrt %169 : vector<16x1xf32>
    %171 = vector.broadcast %170 : vector<16x1xf32> to vector<16x32xf32>
    %172 = arith.mulf %167, %171 : vector<16x32xf32>
    %173 = vector.broadcast %152 : vector<1x32xf32> to vector<16x32xf32>
    %174 = arith.mulf %172, %173 : vector<16x32xf32>
    %175 = vector.broadcast %154 : vector<1x32xf32> to vector<16x32xf32>
    %176 = arith.addf %174, %175 : vector<16x32xf32>
    %177 = arith.truncf %176 : vector<16x32xf32> to vector<16x32xbf16>
    %c0_66 = arith.constant 0 : index
    %c0_67 = arith.constant 0 : index
    %c0_68 = arith.constant 0 : index
    %178 = vector.load %arg14[%c0_66, %c0_67, %c0_68] : memref<1x32x128xbf16, #tpu.memory_space<vmem>>, vector<1x32x128xbf16>
    %179 = vector.shape_cast %178 : vector<1x32x128xbf16> to vector<32x128xbf16>
    %cst_69 = arith.constant dense<0.000000e+00> : vector<16x128xf32>
    %180 = tpu.matmul %177, %179, %cst_69 {dimension_numbers = #tpu.dot_dimension_numbers<[1], [0], [0], [1], [0, 0, 1, 1], [], []>} : vector<16x32xbf16>, vector<32x128xbf16>, vector<16x128xf32> -> vector<16x128xf32>
    %c0_70 = arith.constant 0 : index
    %c0_71 = arith.constant 0 : index
    %c0_72 = arith.constant 0 : index
    %181 = vector.load %arg15[%c0_70, %c0_71, %c0_72] : memref<1x1x128xf32, #tpu.memory_space<vmem>>, vector<1x1x128xf32>
    %182 = vector.shape_cast %181 : vector<1x1x128xf32> to vector<1x128xf32>
    %183 = vector.broadcast %182 : vector<1x128xf32> to vector<16x128xf32>
    %184 = arith.addf %180, %183 : vector<16x128xf32>
    %185 = arith.mulf %184, %184 : vector<16x128xf32>
    %186 = arith.mulf %184, %185 : vector<16x128xf32>
    %cst_73 = arith.constant 4.471500e-02 : f32
    %187 = vector.broadcast %cst_73 : f32 to vector<16x128xf32>
    %188 = arith.mulf %187, %186 : vector<16x128xf32>
    %189 = arith.addf %184, %188 : vector<16x128xf32>
    %cst_74 = arith.constant 0.797884583 : f32
    %190 = vector.broadcast %cst_74 : f32 to vector<16x128xf32>
    %191 = arith.mulf %190, %189 : vector<16x128xf32>
    %192 = math.tanh %191 : vector<16x128xf32>
    %cst_75 = arith.constant 1.000000e+00 : f32
    %193 = vector.broadcast %cst_75 : f32 to vector<16x128xf32>
    %194 = arith.addf %193, %192 : vector<16x128xf32>
    %cst_76 = arith.constant 5.000000e-01 : f32
    %195 = vector.broadcast %cst_76 : f32 to vector<16x128xf32>
    %196 = arith.mulf %195, %194 : vector<16x128xf32>
    %197 = arith.mulf %184, %196 : vector<16x128xf32>
    %198 = arith.truncf %197 : vector<16x128xf32> to vector<16x128xbf16>
    %c0_77 = arith.constant 0 : index
    %c0_78 = arith.constant 0 : index
    %c0_79 = arith.constant 0 : index
    %199 = vector.load %arg16[%c0_77, %c0_78, %c0_79] : memref<1x128x32xbf16, #tpu.memory_space<vmem>>, vector<1x128x32xbf16>
    %200 = vector.shape_cast %199 : vector<1x128x32xbf16> to vector<128x32xbf16>
    %cst_80 = arith.constant dense<0.000000e+00> : vector<16x32xf32>
    %201 = tpu.matmul %198, %200, %cst_80 {dimension_numbers = #tpu.dot_dimension_numbers<[1], [0], [0], [1], [0, 0, 1, 1], [], []>} : vector<16x128xbf16>, vector<128x32xbf16>, vector<16x32xf32> -> vector<16x32xf32>
    %c0_81 = arith.constant 0 : index
    %c0_82 = arith.constant 0 : index
    %c0_83 = arith.constant 0 : index
    %202 = vector.load %arg17[%c0_81, %c0_82, %c0_83] : memref<1x1x32xf32, #tpu.memory_space<vmem>>, vector<1x1x32xf32>
    %203 = vector.shape_cast %202 : vector<1x1x32xf32> to vector<1x32xf32>
    %204 = vector.broadcast %203 : vector<1x32xf32> to vector<16x32xf32>
    %205 = arith.addf %201, %204 : vector<16x32xf32>
    %206 = arith.addf %150, %205 : vector<16x32xf32>
    %c0_84 = arith.constant 0 : index
    %c0_85 = arith.constant 0 : index
    %c0_86 = arith.constant 0 : index
    %207 = vector.load %arg18[%c0_84, %c0_85, %c0_86] : memref<1x16x32xf32, #tpu.memory_space<vmem>>, vector<1x16x32xf32>
    %208 = vector.shape_cast %207 : vector<1x16x32xf32> to vector<16x32xf32>
    %209 = vector.shape_cast %206 : vector<16x32xf32> to vector<1x16x32xf32>
    tpu.vector_store %arg18[%c0_84, %c0_85, %c0_86], %209 {strides = array<i32>} : memref<1x16x32xf32, #tpu.memory_space<vmem>>, vector<1x16x32xf32>,
    return
  }
  func.func @transform_0(%arg0: i32, %arg1: i32) -> (i32, i32, i32) {
    %c0_i32 = arith.constant 0 : i32
    %c0_i32_0 = arith.constant 0 : i32
    %c0_i32_1 = arith.constant 0 : i32
    return %arg0, %c0_i32, %c0_i32_0 : i32, i32, i32
  }
  func.func @transform_1(%arg0: i32, %arg1: i32) -> (i32, i32) {
    %c0_i32 = arith.constant 0 : i32
    %c0_i32_0 = arith.constant 0 : i32
    %c0_i32_1 = arith.constant 0 : i32
    return %c0_i32, %c0_i32_0 : i32, i32
  }
  func.func @transform_2(%arg0: i32, %arg1: i32) -> (i32, i32) {
    %c0_i32 = arith.constant 0 : i32
    %c0_i32_0 = arith.constant 0 : i32
    %c0_i32_1 = arith.constant 0 : i32
    return %c0_i32, %c0_i32_0 : i32, i32
  }
  func.func @transform_3(%arg0: i32, %arg1: i32) -> (i32, i32) {
    %c0_i32 = arith.constant 0 : i32
    %c0_i32_0 = arith.constant 0 : i32
    %c0_i32_1 = arith.constant 0 : i32
    return %c0_i32, %c0_i32_0 : i32, i32
  }
  func.func @transform_4(%arg0: i32, %arg1: i32) -> (i32, i32, i32) {
    %c0_i32 = arith.constant 0 : i32
    %c0_i32_0 = arith.constant 0 : i32
    %c0_i32_1 = arith.constant 0 : i32
    return %arg1, %c0_i32, %c0_i32_0 : i32, i32, i32
  }
  func.func @transform_5(%arg0: i32, %arg1: i32) -> (i32, i32, i32) {
    %c0_i32 = arith.constant 0 : i32
    %c0_i32_0 = arith.constant 0 : i32
    %c0_i32_1 = arith.constant 0 : i32
    return %arg1, %c0_i32, %c0_i32_0 : i32, i32, i32
  }
  func.func @transform_6(%arg0: i32, %arg1: i32) -> (i32, i32, i32) {
    %c0_i32 = arith.constant 0 : i32
    %c0_i32_0 = arith.constant 0 : i32
    %c0_i32_1 = arith.constant 0 : i32
    return %arg1, %c0_i32, %c0_i32_0 : i32, i32, i32
  }
  func.func @transform_7(%arg0: i32, %arg1: i32) -> (i32, i32, i32) {
    %c0_i32 = arith.constant 0 : i32
    %c0_i32_0 = arith.constant 0 : i32
    %c0_i32_1 = arith.constant 0 : i32
    return %arg1, %c0_i32, %c0_i32_0 : i32, i32, i32
  }
  func.func @transform_8(%arg0: i32, %arg1: i32) -> (i32, i32, i32) {
    %c0_i32 = arith.constant 0 : i32
    %c0_i32_0 = arith.constant 0 : i32
    %c0_i32_1 = arith.constant 0 : i32
    return %arg1, %c0_i32, %c0_i32_0 : i32, i32, i32
  }
  func.func @transform_9(%arg0: i32, %arg1: i32) -> (i32, i32, i32) {
    %c0_i32 = arith.constant 0 : i32
    %c0_i32_0 = arith.constant 0 : i32
    %c0_i32_1 = arith.constant 0 : i32
    return %arg1, %c0_i32, %c0_i32_0 : i32, i32, i32
  }
  func.func @transform_10(%arg0: i32, %arg1: i32) -> (i32, i32, i32) {
    %c0_i32 = arith.constant 0 : i32
    %c0_i32_0 = arith.constant 0 : i32
    %c0_i32_1 = arith.constant 0 : i32
    return %arg1, %c0_i32, %c0_i32_0 : i32, i32, i32
  }
  func.func @transform_11(%arg0: i32, %arg1: i32) -> (i32, i32, i32) {
    %c0_i32 = arith.constant 0 : i32
    %c0_i32_0 = arith.constant 0 : i32
    %c0_i32_1 = arith.constant 0 : i32
    return %arg1, %c0_i32, %c0_i32_0 : i32, i32, i32
  }
  func.func @transform_12(%arg0: i32, %arg1: i32) -> (i32, i32, i32) {
    %c0_i32 = arith.constant 0 : i32
    %c0_i32_0 = arith.constant 0 : i32
    %c0_i32_1 = arith.constant 0 : i32
    return %arg1, %c0_i32, %c0_i32_0 : i32, i32, i32
  }
  func.func @transform_13(%arg0: i32, %arg1: i32) -> (i32, i32, i32) {
    %c0_i32 = arith.constant 0 : i32
    %c0_i32_0 = arith.constant 0 : i32
    %c0_i32_1 = arith.constant 0 : i32
    return %arg1, %c0_i32, %c0_i32_0 : i32, i32, i32
  }
  func.func @transform_14(%arg0: i32, %arg1: i32) -> (i32, i32, i32) {
    %c0_i32 = arith.constant 0 : i32
    %c0_i32_0 = arith.constant 0 : i32
    %c0_i32_1 = arith.constant 0 : i32
    return %arg1, %c0_i32, %c0_i32_0 : i32, i32, i32
  }
  func.func @transform_15(%arg0: i32, %arg1: i32) -> (i32, i32, i32) {
    %c0_i32 = arith.constant 0 : i32
    %c0_i32_0 = arith.constant 0 : i32
    %c0_i32_1 = arith.constant 0 : i32
    return %arg1, %c0_i32, %c0_i32_0 : i32, i32, i32
  }
  func.func @transform_16(%arg0: i32, %arg1: i32) -> (i32, i32, i32) {
    %c0_i32 = arith.constant 0 : i32
    %c0_i32_0 = arith.constant 0 : i32
    %c0_i32_1 = arith.constant 0 : i32
    return %arg0, %c0_i32, %c0_i32_0 : i32, i32, i32
  }
}

</mosaic_0001>

<llo_original>
// kernel: actor_forward.3
$region0: #{actor_forward.3}
  #allocation0 [shape = 'u32[]', space=smem, size = 0x4, offset = 0x4, fixed_abs, tag = 'smem constant byte address 0x4 - core index']
  #allocation1 [shape = 'u32[144,128]{1,0:T(1,128)}', space=vmem, size = 0x12000, scoped, tag = 'internal scratch']
  %s0 = inlined_call_operand.vmem [shape: f32[8,32], index: 0, kind: input, shape index: {}]
  %s1 = inlined_call_operand.vmem [shape: f32[1,32], index: 1, kind: input, shape index: {}]
  %s2 = inlined_call_operand.vmem [shape: f32[1,32], index: 2, kind: input, shape index: {}]
  %s3 = inlined_call_operand.vmem [shape: bf16[32,32], index: 3, kind: input, shape index: {}]
  %s4 = inlined_call_operand.vmem [shape: bf16[32,32], index: 4, kind: input, shape index: {}]
  %s5 = inlined_call_operand.vmem [shape: f32[1,32], index: 5, kind: input, shape index: {}]
  %s6 = inlined_call_operand.vmem [shape: bf16[32,32], index: 6, kind: input, shape index: {}]
  %s7 = inlined_call_operand.vmem [shape: f32[1,32], index: 7, kind: input, shape index: {}]
  %s8 = inlined_call_operand.vmem [shape: bf16[32,8], index: 8, kind: input, shape index: {}]
  %s9 = inlined_call_operand.vmem [shape: f32[1,8], index: 9, kind: input, shape index: {}]
  %s10 = inlined_call_operand.hbm [shape: f32[8,8], index: 10, kind: output, shape index: {}]
  %s11 = sld [smem:[#allocation0]]
  $region50: #{actor_forward.3} parent=0
    _
  %s13 = ssub.s32 1, %s11
  %s14 = scalar_select 0, %s13, %s11
  $region1: #{actor_forward.3} parent=0
    #allocation2 [shape = 'u8[4096]{0}', space=vmem, size = 0x1000, scoped, tag = 'output window, operand 0, single buffered']
    #allocation3 [shape = 's32[1]{0}', space=sflag, size = 0x4, scoped, tag = 'scoped memory for actor_forward.3']
    %15 = vsyncpa [#allocation3], 0
    // Predicated region
    $region2: #{actor_forward.3} parent=1 // pred_check
      _
    $region3: #{actor_forward.3} parent=1 // pred_check_branch
      %17 = sbr.rel (0) target = $region5
    $region4: #{actor_forward.3} parent=1 // pred_region
      _
    $region5: #{actor_forward.3} parent=1 // pred_fallthru
      _
    // Predicated region
    $region6: #{actor_forward.3} parent=1 // pred_check
      _
    $region7: #{actor_forward.3} parent=1 // pred_check_branch
      %19 = sbr.rel (0) target = $region9
    $region8: #{actor_forward.3} parent=1 // pred_region
      _
    $region9: #{actor_forward.3} parent=1 // pred_fallthru
      _
    // Predicated region
    $region10: #{actor_forward.3} parent=1 // pred_check
      _
    $region11: #{actor_forward.3} parent=1 // pred_check_branch
      %21 = sbr.rel (0) target = $region13
    $region12: #{actor_forward.3} parent=1 // pred_region
      _
    $region13: #{actor_forward.3} parent=1 // pred_fallthru
      _
    // Predicated region
    $region14: #{actor_forward.3} parent=1 // pred_check
      _
    $region15: #{actor_forward.3} parent=1 // pred_check_branch
      %23 = sbr.rel (0) target = $region17
    $region16: #{actor_forward.3} parent=1 // pred_region
      _
    $region17: #{actor_forward.3} parent=1 // pred_fallthru
      _
    // Predicated region
    $region18: #{actor_forward.3} parent=1 // pred_check
      _
    $region19: #{actor_forward.3} parent=1 // pred_check_branch
      %25 = sbr.rel (0) target = $region21
    $region20: #{actor_forward.3} parent=1 // pred_region
      _
    $region21: #{actor_forward.3} parent=1 // pred_fallthru
      _
    // Predicated region
    $region22: #{actor_forward.3} parent=1 // pred_check
      _
    $region23: #{actor_forward.3} parent=1 // pred_check_branch
      %27 = sbr.rel (0) target = $region25
    $region24: #{actor_forward.3} parent=1 // pred_region
      _
    $region25: #{actor_forward.3} parent=1 // pred_fallthru
      _
    // Predicated region
    $region26: #{actor_forward.3} parent=1 // pred_check
      _
    $region27: #{actor_forward.3} parent=1 // pred_check_branch
      %29 = sbr.rel (0) target = $region29
    $region28: #{actor_forward.3} parent=1 // pred_region
      _
    $region29: #{actor_forward.3} parent=1 // pred_fallthru
      _
    // Predicated region
    $region30: #{actor_forward.3} parent=1 // pred_check
      _
    $region31: #{actor_forward.3} parent=1 // pred_check_branch
      %31 = sbr.rel (0) target = $region33
    $region32: #{actor_forward.3} parent=1 // pred_region
      _
    $region33: #{actor_forward.3} parent=1 // pred_fallthru
      _
    // Predicated region
    $region34: #{actor_forward.3} parent=1 // pred_check
      _
    $region35: #{actor_forward.3} parent=1 // pred_check_branch
      %33 = sbr.rel (0) target = $region37
    $region36: #{actor_forward.3} parent=1 // pred_region
      _
    $region37: #{actor_forward.3} parent=1 // pred_fallthru
      _
    // Predicated region
    $region38: #{actor_forward.3} parent=1 // pred_check
      _
    $region39: #{actor_forward.3} parent=1 // pred_check_branch
      %35 = sbr.rel (0) target = $region41
    $region40: #{actor_forward.3} parent=1 // pred_region
      _
    $region41: #{actor_forward.3} parent=1 // pred_fallthru
      _
    %v37 = vld [vmem:[%s0] sm:$0xff]
    %v38 = vld [vmem:[%s1] sm:$0x1]
    %v39 = vld [vmem:[%s2] sm:$0x1]
    %vm40 = vcmask 261120
    %v41 = vsel %vm40, %v37, 0.0
    %42 = vadd.xlane.f32.xlu0 %v41
    %v43 = vpop.xlane.xlu0 %42
    %v44 = vrcp.pop 32.0
    %v45 = vmul.f32 %v43, %v44
    %v46 = vsub.f32 %v37, %v45
    %v47 = vmul.f32 %v46, %v46
    %v48 = vsel %vm40, %v47, 0.0
    %49 = vadd.xlane.f32.xlu0 %v48
    %v50 = vpop.xlane.xlu0 %49
    %v51 = vmul.f32 %v50, %v44
    %v52 = vadd.f32 %v51, 1e-05
    %v53 = vrsqrt.pop %v52
    %v54 = vmul.f32 %v46, %v53
    %v56 = vlaneseq
    %v57 = vshrl.u32 %v56, 7
    %v58 = vsub.s32 0, %v57
    %v59 = vrot.slane %v38, %v58
    %v61 = vmul.f32 %v54, %v59
    %v63 = vlaneseq
    %v64 = vshrl.u32 %v63, 7
    %v65 = vsub.s32 0, %v64
    %v66 = vrot.slane %v39, %v65
    %v68 = vadd.f32 %v61, %v66
    %v69 = vpack.c.bf16 %v68, %v68
    %v70 = vld [vmem:[%s3] sm:$0xf]
    %v71 = vld [vmem:[%s3 + $0x4] sm:$0xf]
    %v72 = vld [vmem:[%s3 + $0x8] sm:$0xf]
    %v73 = vld [vmem:[%s3 + $0xc] sm:$0xf]
    %v78 = vunpack.c.l.b16 %v70
    %v79 = vunpack.c.l.b16 %v71
    %v80 = vunpack.c.l.b16 %v72
    %v81 = vunpack.c.l.b16 %v73
    %v82 = vpack.c.b16 %v79, %v78
    %v83 = vpack.c.b16 %v81, %v80
    %v87 = vsel %vm40, %v69, 0
    %89 = vmatprep.subr.bf16.mxu0 0
    %90 = vmatpush1.bf16.msra.mxu0 %v82
    %91 = vmatprep.subr.bf16.mxu0 0
    %92 = vmatpush1.bf16.msra.mxu0 %v83
    %93 = vmatprep.subr.bf16.mxu0 0
    %94 = vmatpush1.bf16.msra.mxu0 0
    %95 = vmatprep.subr.bf16.mxu0 0
    %96 = vmatpush1.bf16.msra.mxu0 0
    %97 = vmatprep.subr.bf16.mxu0 0
    %98 = vmatpush1.bf16.msra.mxu0 0
    %99 = vmatprep.subr.bf16.mxu0 0
    %100 = vmatpush1.bf16.msra.mxu0 0
    %101 = vmatprep.subr.bf16.mxu0 0
    %102 = vmatpush1.bf16.msra.mxu0 0
    %103 = vmatprep.subr.bf16.mxu0 0
    %104 = vmatpush1.bf16.msra.mxu0 0
    %105 = vmatprep.subr.bf16.mxu0 0
    %106 = vmatpush1.bf16.msra.mxu0 0
    %107 = vmatprep.subr.bf16.mxu0 0
    %108 = vmatpush1.bf16.msra.mxu0 0
    %109 = vmatprep.subr.bf16.mxu0 0
    %110 = vmatpush1.bf16.msra.mxu0 0
    %111 = vmatprep.subr.bf16.mxu0 0
    %112 = vmatpush1.bf16.msra.mxu0 0
    %113 = vmatprep.subr.bf16.mxu0 0
    %114 = vmatpush1.bf16.msra.mxu0 0
    %115 = vmatprep.subr.bf16.mxu0 0
    %116 = vmatpush1.bf16.msra.mxu0 0
    %117 = vmatprep.subr.bf16.mxu0 0
    %118 = vmatpush1.bf16.msra.mxu0 0
    %119 = vmatprep.subr.bf16.mxu0 0
    %120 = vmatpush1.bf16.msra.mxu0 0
    %121 = vmatprep.mubr.bf16.mxu0 0
    %122 = vmatmul.mubr.bf16.gmra.mrb[0].mxu0 %v87
    %v123 = vpop.f32.mrb[0].mxu0
    %v124 = vadd.f32 0.0, %v123
    %v125 = vpop.f32.mrb[0].mxu0
    %v126 = vpop.f32.mrb[0].mxu0
    %v127 = vpop.f32.mrb[0].mxu0
    %128 = vdwg.mxu0
    %v129 = vpack.c.bf16 %v124, %v124
    %v130 = vld [vmem:[%s4] sm:$0xf]
    %v131 = vld [vmem:[%s4 + $0x4] sm:$0xf]
    %v132 = vld [vmem:[%s4 + $0x8] sm:$0xf]
    %v133 = vld [vmem:[%s4 + $0xc] sm:$0xf]
    %v134 = vld [vmem:[%s5] sm:$0x1]
    %v136 = vlaneseq
    %v137 = vshrl.u32 %v136, 7
    %v138 = vsub.s32 0, %v137
    %v139 = vrot.slane %v134, %v138
    %v145 = vunpack.c.l.b16 %v130
    %v146 = vunpack.c.l.b16 %v131
    %v147 = vunpack.c.l.b16 %v132
    %v148 = vunpack.c.l.b16 %v133
    %v149 = vpack.c.b16 %v146, %v145
    %v150 = vpack.c.b16 %v148, %v147
    %v154 = vsel %vm40, %v129, 0
    %156 = vmatprep.subr.bf16.mxu0 0
    %157 = vmatpush1.bf16.msra.mxu0 %v149
    %158 = vmatprep.subr.bf16.mxu0 0
    %159 = vmatpush1.bf16.msra.mxu0 %v150
    %160 = vmatprep.subr.bf16.mxu0 0
    %161 = vmatpush1.bf16.msra.mxu0 0
    %162 = vmatprep.subr.bf16.mxu0 0
    %163 = vmatpush1.bf16.msra.mxu0 0
    %164 = vmatprep.subr.bf16.mxu0 0
    %165 = vmatpush1.bf16.msra.mxu0 0
    %166 = vmatprep.subr.bf16.mxu0 0
    %167 = vmatpush1.bf16.msra.mxu0 0
    %168 = vmatprep.subr.bf16.mxu0 0
    %169 = vmatpush1.bf16.msra.mxu0 0
    %170 = vmatprep.subr.bf16.mxu0 0
    %171 = vmatpush1.bf16.msra.mxu0 0
    %172 = vmatprep.subr.bf16.mxu0 0
    %173 = vmatpush1.bf16.msra.mxu0 0
    %174 = vmatprep.subr.bf16.mxu0 0
    %175 = vmatpush1.bf16.msra.mxu0 0
    %176 = vmatprep.subr.bf16.mxu0 0
    %177 = vmatpush1.bf16.msra.mxu0 0
    %178 = vmatprep.subr.bf16.mxu0 0
    %179 = vmatpush1.bf16.msra.mxu0 0
    %180 = vmatprep.subr.bf16.mxu0 0
    %181 = vmatpush1.bf16.msra.mxu0 0
    %182 = vmatprep.subr.bf16.mxu0 0
    %183 = vmatpush1.bf16.msra.mxu0 0
    %184 = vmatprep.subr.bf16.mxu0 0
    %185 = vmatpush1.bf16.msra.mxu0 0
    %186 = vmatprep.subr.bf16.mxu0 0
    %187 = vmatpush1.bf16.msra.mxu0 0
    %188 = vmatprep.mubr.bf16.mxu0 0
    %189 = vmatmul.mubr.bf16.gmra.mrb[0].mxu0 %v154
    %v190 = vpop.f32.mrb[0].mxu0
    %v191 = vadd.f32 %v139, %v190
    %v192 = vpop.f32.mrb[0].mxu0
    %v193 = vpop.f32.mrb[0].mxu0
    %v194 = vpop.f32.mrb[0].mxu0
    %195 = vdwg.mxu0
    %v196 = vmax.f32 %v191, 0.0
    %v197 = vpack.c.bf16 %v196, %v196
    %v198 = vld [vmem:[%s6] sm:$0xf]
    %v199 = vld [vmem:[%s6 + $0x4] sm:$0xf]
    %v200 = vld [vmem:[%s6 + $0x8] sm:$0xf]
    %v201 = vld [vmem:[%s6 + $0xc] sm:$0xf]
    %v202 = vld [vmem:[%s7] sm:$0x1]
    %v204 = vlaneseq
    %v205 = vshrl.u32 %v204, 7
    %v206 = vsub.s32 0, %v205
    %v207 = vrot.slane %v202, %v206
    %v213 = vunpack.c.l.b16 %v198
    %v214 = vunpack.c.l.b16 %v199
    %v215 = vunpack.c.l.b16 %v200
    %v216 = vunpack.c.l.b16 %v201
    %v217 = vpack.c.b16 %v214, %v213
    %v218 = vpack.c.b16 %v216, %v215
    %v222 = vsel %vm40, %v197, 0
    %224 = vmatprep.subr.bf16.mxu0 0
    %225 = vmatpush1.bf16.msra.mxu0 %v217
    %226 = vmatprep.subr.bf16.mxu0 0
    %227 = vmatpush1.bf16.msra.mxu0 %v218
    %228 = vmatprep.subr.bf16.mxu0 0
    %229 = vmatpush1.bf16.msra.mxu0 0
    %230 = vmatprep.subr.bf16.mxu0 0
    %231 = vmatpush1.bf16.msra.mxu0 0
    %232 = vmatprep.subr.bf16.mxu0 0
    %233 = vmatpush1.bf16.msra.mxu0 0
    %234 = vmatprep.subr.bf16.mxu0 0
    %235 = vmatpush1.bf16.msra.mxu0 0
    %236 = vmatprep.subr.bf16.mxu0 0
    %237 = vmatpush1.bf16.msra.mxu0 0
    %238 = vmatprep.subr.bf16.mxu0 0
    %239 = vmatpush1.bf16.msra.mxu0 0
    %240 = vmatprep.subr.bf16.mxu0 0
    %241 = vmatpush1.bf16.msra.mxu0 0
    %242 = vmatprep.subr.bf16.mxu0 0
    %243 = vmatpush1.bf16.msra.mxu0 0
    %244 = vmatprep.subr.bf16.mxu0 0
    %245 = vmatpush1.bf16.msra.mxu0 0
    %246 = vmatprep.subr.bf16.mxu0 0
    %247 = vmatpush1.bf16.msra.mxu0 0
    %248 = vmatprep.subr.bf16.mxu0 0
    %249 = vmatpush1.bf16.msra.mxu0 0
    %250 = vmatprep.subr.bf16.mxu0 0
    %251 = vmatpush1.bf16.msra.mxu0 0
    %252 = vmatprep.subr.bf16.mxu0 0
    %253 = vmatpush1.bf16.msra.mxu0 0
    %254 = vmatprep.subr.bf16.mxu0 0
    %255 = vmatpush1.bf16.msra.mxu0 0
    %256 = vmatprep.mubr.bf16.mxu0 0
    %257 = vmatmul.mubr.bf16.gmra.mrb[0].mxu0 %v222
    %v258 = vpop.f32.mrb[0].mxu0
    %v259 = vadd.f32 %v207, %v258
    %v260 = vpop.f32.mrb[0].mxu0
    %v261 = vpop.f32.mrb[0].mxu0
    %v262 = vpop.f32.mrb[0].mxu0
    %263 = vdwg.mxu0
    %v264 = vmax.f32 %v259, 0.0
    %v265 = vpack.c.bf16 %v264, %v264
    %v266 = vld [vmem:[%s8] sm:$0xf]
    %v267 = vld [vmem:[%s8 + $0x4] sm:$0xf]
    %v268 = vld [vmem:[%s8 + $0x8] sm:$0xf]
    %v269 = vld [vmem:[%s8 + $0xc] sm:$0xf]
    %v270 = vld [vmem:[%s9] sm:$0x1]
    %v272 = vlaneseq
    %v273 = vshrl.u32 %v272, 7
    %v274 = vsub.s32 0, %v273
    %v275 = vrot.slane %v270, %v274
    %v281 = vunpack.c.l.b16 %v266
    %v282 = vunpack.c.l.b16 %v267
    %v283 = vunpack.c.l.b16 %v268
    %v284 = vunpack.c.l.b16 %v269
    %v285 = vpack.c.b16 %v282, %v281
    %v286 = vpack.c.b16 %v284, %v283
    %v290 = vsel %vm40, %v265, 0
    %292 = vmatprep.subr.bf16.mxu0 0
    %293 = vmatpush1.bf16.msra.mxu0 %v285
    %294 = vmatprep.subr.bf16.mxu0 0
    %295 = vmatpush1.bf16.msra.mxu0 %v286
    %296 = vmatprep.subr.bf16.mxu0 0
    %297 = vmatpush1.bf16.msra.mxu0 0
    %298 = vmatprep.subr.bf16.mxu0 0
    %299 = vmatpush1.bf16.msra.mxu0 0
    %300 = vmatprep.subr.bf16.mxu0 0
    %301 = vmatpush1.bf16.msra.mxu0 0
    %302 = vmatprep.subr.bf16.mxu0 0
    %303 = vmatpush1.bf16.msra.mxu0 0
    %304 = vmatprep.subr.bf16.mxu0 0
    %305 = vmatpush1.bf16.msra.mxu0 0
    %306 = vmatprep.subr.bf16.mxu0 0
    %307 = vmatpush1.bf16.msra.mxu0 0
    %308 = vmatprep.subr.bf16.mxu0 0
    %309 = vmatpush1.bf16.msra.mxu0 0
    %310 = vmatprep.subr.bf16.mxu0 0
    %311 = vmatpush1.bf16.msra.mxu0 0
    %312 = vmatprep.subr.bf16.mxu0 0
    %313 = vmatpush1.bf16.msra.mxu0 0
    %314 = vmatprep.subr.bf16.mxu0 0
    %315 = vmatpush1.bf16.msra.mxu0 0
    %316 = vmatprep.subr.bf16.mxu0 0
    %317 = vmatpush1.bf16.msra.mxu0 0
    %318 = vmatprep.subr.bf16.mxu0 0
    %319 = vmatpush1.bf16.msra.mxu0 0
    %320 = vmatprep.subr.bf16.mxu0 0
    %321 = vmatpush1.bf16.msra.mxu0 0
    %322 = vmatprep.subr.bf16.mxu0 0
    %323 = vmatpush1.bf16.msra.mxu0 0
    %324 = vmatprep.mubr.bf16.mxu0 0
    %325 = vmatmul.mubr.bf16.gmra.mrb[0].mxu0 %v290
    %v326 = vpop.f32.mrb[0].mxu0
    %v327 = vadd.f32 %v275, %v326
    %v328 = vpop.f32.mrb[0].mxu0
    %v329 = vpop.f32.mrb[0].mxu0
    %v330 = vpop.f32.mrb[0].mxu0
    %331 = vdwg.mxu0
    %v332 = vtanh.pop %v327
    %vm333 = vcmask 64512
    %334 = vst.msk [vmem:[#allocation2] sm:$0xff] %vm333, %v332
    // Predicated region
    $region42: #{actor_forward.3} parent=1 // pred_check
      _
    $region43: #{actor_forward.3} parent=1 // pred_check_branch
      %336 = sbr.rel (0) target = $region45
    $region44: #{actor_forward.3} parent=1 // pred_region
      %s338 = ssub.s32 128, 128
      %339 = vsyncadd [#allocation3], %s338
      %s341 = sshll.u32 [#allocation2], 4
      %s342 = int_to_ptr.vmem [resolvable:$true] %s341
      %344 = dma.vmem_to_hbm [thread:$0]  %s342, 128, %s10, [#allocation3]
    $region45: #{actor_forward.3} parent=1 // pred_fallthru
      _
    // Predicated region
    $region46: #{actor_forward.3} parent=1 // pred_check
      _
    $region47: #{actor_forward.3} parent=1 // pred_check_branch
      %346 = sbr.rel (0) target = $region49
    $region48: #{actor_forward.3} parent=1 // pred_region
      %347 = dma.done [#allocation3], 128
    $region49: #{actor_forward.3} parent=1 // pred_fallthru
      _
    %348 = vsyncpa [#allocation3], 1

// kernel: actor_forward.2
$region0: #{actor_forward.2}
  #allocation0 [shape = 'u32[]', space=smem, size = 0x4, offset = 0x4, fixed_abs, tag = 'smem constant byte address 0x4 - core index']
  #allocation1 [shape = 'u32[144,128]{1,0:T(1,128)}', space=vmem, size = 0x12000, scoped, tag = 'internal scratch']
  %s0 = inlined_call_operand.vmem [shape: f32[2,16,32], index: 0, kind: input, shape index: {}]
  %s1 = inlined_call_operand.vmem [shape: bf16[32,32], index: 1, kind: input, shape index: {}]
  %s2 = inlined_call_operand.vmem [shape: f32[1,32], index: 2, kind: input, shape index: {}]
  %s3 = inlined_call_operand.vmem [shape: f32[16,32], index: 3, kind: input, shape index: {}]
  %s4 = inlined_call_operand.vmem [shape: f32[8,1,32], index: 4, kind: input, shape index: {}]
  %s5 = inlined_call_operand.vmem [shape: f32[8,1,32], index: 5, kind: input, shape index: {}]
  %s6 = inlined_call_operand.vmem [shape: bf16[8,32,96], index: 6, kind: input, shape index: {}]
  %s7 = inlined_call_operand.vmem [shape: f32[8,1,96], index: 7, kind: input, shape index: {}]
  %s8 = inlined_call_operand.vmem [shape: bf16[8,32,32], index: 8, kind: input, shape index: {}]
  %s9 = inlined_call_operand.vmem [shape: f32[8,1,32], index: 9, kind: input, shape index: {}]
  %s10 = inlined_call_operand.vmem [shape: f32[8,1,32], index: 10, kind: input, shape index: {}]
  %s11 = inlined_call_operand.vmem [shape: f32[8,1,32], index: 11, kind: input, shape index: {}]
  %s12 = inlined_call_operand.vmem [shape: bf16[8,32,128], index: 12, kind: input, shape index: {}]
  %s13 = inlined_call_operand.vmem [shape: f32[8,1,128], index: 13, kind: input, shape index: {}]
  %s14 = inlined_call_operand.vmem [shape: bf16[8,128,32], index: 14, kind: input, shape index: {}]
  %s15 = inlined_call_operand.vmem [shape: f32[8,1,32], index: 15, kind: input, shape index: {}]
  %s16 = inlined_call_operand.vmem [shape: f32[2,16,32], index: 16, kind: output, shape index: {}]
  %s17 = sld [smem:[#allocation0]]
  $region101: #{actor_forward.2} parent=0
    _
  %s19 = ssub.s32 1, %s17
  %s20 = scalar_select 0, %s19, %s17
  loop: start=0, step=1, limit=18
  $region2: #{actor_forward.2} parent=0 // loop_pre_header
    _
  $region3: #{actor_forward.2} parent=0 // loop_header
    %s22 = sphi 0, %s26
    %p23 = scmp.ge.s32.totalorder %s22, 18
    %s29 = sphi 0, %s41
    %s30 = sphi 0, %s37
    %s31 = sphi 0, %s29
    %s32 = sphi 0, %s30
    %s33 = sphi 0, %s31
    %s34 = sphi 0, %s32
    %s44 = sphi 0, %s46
    %s47 = sphi 0, %s44
    %s48 = sphi 0, %s47
    %s64 = sphi 0, %s48
    %s68 = sphi 0, %s68
    %s70 = sphi 0, %s68
    %s71 = sphi 0, %s70
    %s85 = sphi 0, %s71
    %s89 = sphi 0, %s89
    %s91 = sphi 0, %s89
    %s92 = sphi 0, %s91
    %s106 = sphi 0, %s92
    %s110 = sphi 0, %s110
    %s112 = sphi 0, %s110
    %s113 = sphi 0, %s112
    %s127 = sphi 0, %s113
    %s133 = sphi 0, %s135
    %s136 = sphi 0, %s133
    %s137 = sphi 0, %s136
    %s153 = sphi 0, %s137
    %s159 = sphi 0, %s161
    %s162 = sphi 0, %s159
    %s163 = sphi 0, %s162
    %s179 = sphi 0, %s163
    %s185 = sphi 0, %s187
    %s188 = sphi 0, %s185
    %s189 = sphi 0, %s188
    %s205 = sphi 0, %s189
    %s211 = sphi 0, %s213
    %s214 = sphi 0, %s211
    %s215 = sphi 0, %s214
    %s231 = sphi 0, %s215
    %s237 = sphi 0, %s239
    %s240 = sphi 0, %s237
    %s241 = sphi 0, %s240
    %s257 = sphi 0, %s241
    %s263 = sphi 0, %s265
    %s266 = sphi 0, %s263
    %s267 = sphi 0, %s266
    %s283 = sphi 0, %s267
    %s289 = sphi 0, %s291
    %s292 = sphi 0, %s289
    %s293 = sphi 0, %s292
    %s309 = sphi 0, %s293
    %s315 = sphi 0, %s317
    %s318 = sphi 0, %s315
    %s319 = sphi 0, %s318
    %s335 = sphi 0, %s319
    %s341 = sphi 0, %s343
    %s344 = sphi 0, %s341
    %s345 = sphi 0, %s344
    %s361 = sphi 0, %s345
    %s367 = sphi 0, %s369
    %s370 = sphi 0, %s367
    %s371 = sphi 0, %s370
    %s387 = sphi 0, %s371
    %s393 = sphi 0, %s395
    %s396 = sphi 0, %s393
    %s397 = sphi 0, %s396
    %s413 = sphi 0, %s397
    %s419 = sphi 0, %s421
    %s422 = sphi 0, %s419
    %s423 = sphi 0, %s422
    %s439 = sphi 0, %s423
    %s445 = sphi 0, %s447
    %s448 = sphi 0, %s445
    %s449 = sphi 0, %s448
    %s465 = sphi 0, %s449
  $region4: #{actor_forward.2} parent=0 // loop_header_branch
    %25 = sbr.rel (%p23) target = $region8
  $region5: #{actor_forward.2} parent=0 // loop_body
    %s27 = ssub.s32 %s22, 1
    %s28 = ssub.s32 %s22, 2
    %s35 = sadd.s32 1, %s30
    %p36 = scmp.ge.s32.totalorder %s35, 8
    %s37 = scalar_select %p36, 0, %s35
    %s38 = sadd.s32 1, %s29
    %s39 = scalar_select %p36, %s38, %s29
    %p40 = scmp.ge.s32.totalorder %s39, 2
    %s41 = scalar_select %p40, 0, %s39
    %s42 = ssub.s32 %s29, %s41
    %p43 = scmp.eq.s32.totalorder %s42, 0
    %s45 = sadd.s32 %s44, 1
    %s46 = scalar_select %p43, %s44, %s45
    %p49 = pneg %p43
    %p50 = scmp.eq.s32.totalorder %s22, 15
    %p51 = por %p49, %p50
    %p52 = scmp.ne.s32.totalorder %s44, %s47
    %p53 = scmp.eq.s32.totalorder %s22, 0
    %p54 = por %p52, %p53
    %p55 = scmp.ne.s32.totalorder %s44, %s47
    %p56 = scmp.eq.s32.totalorder %s27, 15
    %p57 = por %p55, %p56
    %p58 = scmp.ne.s32.totalorder %s47, %s48
    %p59 = scmp.eq.s32.totalorder %s27, 0
    %p60 = por %p58, %p59
    %p61 = scmp.ne.s32.totalorder %s47, %s48
    %p62 = scmp.eq.s32.totalorder %s28, 15
    %p63 = por %p61, %p62
    %p65 = scmp.ne.s32.totalorder %s48, %s64
    %p66 = scmp.eq.s32.totalorder %s28, 0
    %p67 = por %p65, %p66
    %s69 = sadd.s32 %s68, 1
    %p72 = scmp.eq.s32.totalorder %s22, 15
    %p73 = scmp.ne.s32.totalorder %s68, %s70
    %p74 = scmp.eq.s32.totalorder %s22, 0
    %p75 = por %p73, %p74
    %p76 = scmp.ne.s32.totalorder %s68, %s70
    %p77 = scmp.eq.s32.totalorder %s27, 15
    %p78 = por %p76, %p77
    %p79 = scmp.ne.s32.totalorder %s70, %s71
    %p80 = scmp.eq.s32.totalorder %s27, 0
    %p81 = por %p79, %p80
    %p82 = scmp.ne.s32.totalorder %s70, %s71
    %p83 = scmp.eq.s32.totalorder %s28, 15
    %p84 = por %p82, %p83
    %p86 = scmp.ne.s32.totalorder %s71, %s85
    %p87 = scmp.eq.s32.totalorder %s28, 0
    %p88 = por %p86, %p87
    %s90 = sadd.s32 %s89, 1
    %p93 = scmp.eq.s32.totalorder %s22, 15
    %p94 = scmp.ne.s32.totalorder %s89, %s91
    %p95 = scmp.eq.s32.totalorder %s22, 0
    %p96 = por %p94, %p95
    %p97 = scmp.ne.s32.totalorder %s89, %s91
    %p98 = scmp.eq.s32.totalorder %s27, 15
    %p99 = por %p97, %p98
    %p100 = scmp.ne.s32.totalorder %s91, %s92
    %p101 = scmp.eq.s32.totalorder %s27, 0
    %p102 = por %p100, %p101
    %p103 = scmp.ne.s32.totalorder %s91, %s92
    %p104 = scmp.eq.s32.totalorder %s28, 15
    %p105 = por %p103, %p104
    %p107 = scmp.ne.s32.totalorder %s92, %s106
    %p108 = scmp.eq.s32.totalorder %s28, 0
    %p109 = por %p107, %p108
    %s111 = sadd.s32 %s110, 1
    %p114 = scmp.eq.s32.totalorder %s22, 15
    %p115 = scmp.ne.s32.totalorder %s110, %s112
    %p116 = scmp.eq.s32.totalorder %s22, 0
    %p117 = por %p115, %p116
    %p118 = scmp.ne.s32.totalorder %s110, %s112
    %p119 = scmp.eq.s32.totalorder %s27, 15
    %p120 = por %p118, %p119
    %p121 = scmp.ne.s32.totalorder %s112, %s113
    %p122 = scmp.eq.s32.totalorder %s27, 0
    %p123 = por %p121, %p122
    %p124 = scmp.ne.s32.totalorder %s112, %s113
    %p125 = scmp.eq.s32.totalorder %s28, 15
    %p126 = por %p124, %p125
    %p128 = scmp.ne.s32.totalorder %s113, %s127
    %p129 = scmp.eq.s32.totalorder %s28, 0
    %p130 = por %p128, %p129
    %s131 = ssub.s32 %s30, %s37
    %p132 = scmp.eq.s32.totalorder %s131, 0
    %s134 = sadd.s32 %s133, 1
    %s135 = scalar_select %p132, %s133, %s134
    %p138 = pneg %p132
    %p139 = scmp.eq.s32.totalorder %s22, 15
    %p140 = por %p138, %p139
    %p141 = scmp.ne.s32.totalorder %s133, %s136
    %p142 = scmp.eq.s32.totalorder %s22, 0
    %p143 = por %p141, %p142
    %p144 = scmp.ne.s32.totalorder %s133, %s136
    %p145 = scmp.eq.s32.totalorder %s27, 15
    %p146 = por %p144, %p145
    %p147 = scmp.ne.s32.totalorder %s136, %s137
    %p148 = scmp.eq.s32.totalorder %s27, 0
    %p149 = por %p147, %p148
    %p150 = scmp.ne.s32.totalorder %s136, %s137
    %p151 = scmp.eq.s32.totalorder %s28, 15
    %p152 = por %p150, %p151
    %p154 = scmp.ne.s32.totalorder %s137, %s153
    %p155 = scmp.eq.s32.totalorder %s28, 0
    %p156 = por %p154, %p155
    %s157 = ssub.s32 %s30, %s37
    %p158 = scmp.eq.s32.totalorder %s157, 0
    %s160 = sadd.s32 %s159, 1
    %s161 = scalar_select %p158, %s159, %s160
    %p164 = pneg %p158
    %p165 = scmp.eq.s32.totalorder %s22, 15
    %p166 = por %p164, %p165
    %p167 = scmp.ne.s32.totalorder %s159, %s162
    %p168 = scmp.eq.s32.totalorder %s22, 0
    %p169 = por %p167, %p168
    %p170 = scmp.ne.s32.totalorder %s159, %s162
    %p171 = scmp.eq.s32.totalorder %s27, 15
    %p172 = por %p170, %p171
    %p173 = scmp.ne.s32.totalorder %s162, %s163
    %p174 = scmp.eq.s32.totalorder %s27, 0
    %p175 = por %p173, %p174
    %p176 = scmp.ne.s32.totalorder %s162, %s163
    %p177 = scmp.eq.s32.totalorder %s28, 15
    %p178 = por %p176, %p177
    %p180 = scmp.ne.s32.totalorder %s163, %s179
    %p181 = scmp.eq.s32.totalorder %s28, 0
    %p182 = por %p180, %p181
    %s183 = ssub.s32 %s30, %s37
    %p184 = scmp.eq.s32.totalorder %s183, 0
    %s186 = sadd.s32 %s185, 1
    %s187 = scalar_select %p184, %s185, %s186
    %p190 = pneg %p184
    %p191 = scmp.eq.s32.totalorder %s22, 15
    %p192 = por %p190, %p191
    %p193 = scmp.ne.s32.totalorder %s185, %s188
    %p194 = scmp.eq.s32.totalorder %s22, 0
    %p195 = por %p193, %p194
    %p196 = scmp.ne.s32.totalorder %s185, %s188
    %p197 = scmp.eq.s32.totalorder %s27, 15
    %p198 = por %p196, %p197
    %p199 = scmp.ne.s32.totalorder %s188, %s189
    %p200 = scmp.eq.s32.totalorder %s27, 0
    %p201 = por %p199, %p200
    %p202 = scmp.ne.s32.totalorder %s188, %s189
    %p203 = scmp.eq.s32.totalorder %s28, 15
    %p204 = por %p202, %p203
    %p206 = scmp.ne.s32.totalorder %s189, %s205
    %p207 = scmp.eq.s32.totalorder %s28, 0
    %p208 = por %p206, %p207
    %s209 = ssub.s32 %s30, %s37
    %p210 = scmp.eq.s32.totalorder %s209, 0
    %s212 = sadd.s32 %s211, 1
    %s213 = scalar_select %p210, %s211, %s212
    %p216 = pneg %p210
    %p217 = scmp.eq.s32.totalorder %s22, 15
    %p218 = por %p216, %p217
    %p219 = scmp.ne.s32.totalorder %s211, %s214
    %p220 = scmp.eq.s32.totalorder %s22, 0
    %p221 = por %p219, %p220
    %p222 = scmp.ne.s32.totalorder %s211, %s214
    %p223 = scmp.eq.s32.totalorder %s27, 15
    %p224 = por %p222, %p223
    %p225 = scmp.ne.s32.totalorder %s214, %s215
    %p226 = scmp.eq.s32.totalorder %s27, 0
    %p227 = por %p225, %p226
    %p228 = scmp.ne.s32.totalorder %s214, %s215
    %p229 = scmp.eq.s32.totalorder %s28, 15
    %p230 = por %p228, %p229
    %p232 = scmp.ne.s32.totalorder %s215, %s231
    %p233 = scmp.eq.s32.totalorder %s28, 0
    %p234 = por %p232, %p233
    %s235 = ssub.s32 %s30, %s37
    %p236 = scmp.eq.s32.totalorder %s235, 0
    %s238 = sadd.s32 %s237, 1
    %s239 = scalar_select %p236, %s237, %s238
    %p242 = pneg %p236
    %p243 = scmp.eq.s32.totalorder %s22, 15
    %p244 = por %p242, %p243
    %p245 = scmp.ne.s32.totalorder %s237, %s240
    %p246 = scmp.eq.s32.totalorder %s22, 0
    %p247 = por %p245, %p246
    %p248 = scmp.ne.s32.totalorder %s237, %s240
    %p249 = scmp.eq.s32.totalorder %s27, 15
    %p250 = por %p248, %p249
    %p251 = scmp.ne.s32.totalorder %s240, %s241
    %p252 = scmp.eq.s32.totalorder %s27, 0
    %p253 = por %p251, %p252
    %p254 = scmp.ne.s32.totalorder %s240, %s241
    %p255 = scmp.eq.s32.totalorder %s28, 15
    %p256 = por %p254, %p255
    %p258 = scmp.ne.s32.totalorder %s241, %s257
    %p259 = scmp.eq.s32.totalorder %s28, 0
    %p260 = por %p258, %p259
    %s261 = ssub.s32 %s30, %s37
    %p262 = scmp.eq.s32.totalorder %s261, 0
    %s264 = sadd.s32 %s263, 1
    %s265 = scalar_select %p262, %s263, %s264
    %p268 = pneg %p262
    %p269 = scmp.eq.s32.totalorder %s22, 15
    %p270 = por %p268, %p269
    %p271 = scmp.ne.s32.totalorder %s263, %s266
    %p272 = scmp.eq.s32.totalorder %s22, 0
    %p273 = por %p271, %p272
    %p274 = scmp.ne.s32.totalorder %s263, %s266
    %p275 = scmp.eq.s32.totalorder %s27, 15
    %p276 = por %p274, %p275
    %p277 = scmp.ne.s32.totalorder %s266, %s267
    %p278 = scmp.eq.s32.totalorder %s27, 0
    %p279 = por %p277, %p278
    %p280 = scmp.ne.s32.totalorder %s266, %s267
    %p281 = scmp.eq.s32.totalorder %s28, 15
    %p282 = por %p280, %p281
    %p284 = scmp.ne.s32.totalorder %s267, %s283
    %p285 = scmp.eq.s32.totalorder %s28, 0
    %p286 = por %p284, %p285
    %s287 = ssub.s32 %s30, %s37
    %p288 = scmp.eq.s32.totalorder %s287, 0
    %s290 = sadd.s32 %s289, 1
    %s291 = scalar_select %p288, %s289, %s290
    %p294 = pneg %p288
    %p295 = scmp.eq.s32.totalorder %s22, 15
    %p296 = por %p294, %p295
    %p297 = scmp.ne.s32.totalorder %s289, %s292
    %p298 = scmp.eq.s32.totalorder %s22, 0
    %p299 = por %p297, %p298
    %p300 = scmp.ne.s32.totalorder %s289, %s292
    %p301 = scmp.eq.s32.totalorder %s27, 15
    %p302 = por %p300, %p301
    %p303 = scmp.ne.s32.totalorder %s292, %s293
    %p304 = scmp.eq.s32.totalorder %s27, 0
    %p305 = por %p303, %p304
    %p306 = scmp.ne.s32.totalorder %s292, %s293
    %p307 = scmp.eq.s32.totalorder %s28, 15
    %p308 = por %p306, %p307
    %p310 = scmp.ne.s32.totalorder %s293, %s309
    %p311 = scmp.eq.s32.totalorder %s28, 0
    %p312 = por %p310, %p311
    %s313 = ssub.s32 %s30, %s37
    %p314 = scmp.eq.s32.totalorder %s313, 0
    %s316 = sadd.s32 %s315, 1
    %s317 = scalar_select %p314, %s315, %s316
    %p320 = pneg %p314
    %p321 = scmp.eq.s32.totalorder %s22, 15
    %p322 = por %p320, %p321
    %p323 = scmp.ne.s32.totalorder %s315, %s318
    %p324 = scmp.eq.s32.totalorder %s22, 0
    %p325 = por %p323, %p324
    %p326 = scmp.ne.s32.totalorder %s315, %s318
    %p327 = scmp.eq.s32.totalorder %s27, 15
    %p328 = por %p326, %p327
    %p329 = scmp.ne.s32.totalorder %s318, %s319
    %p330 = scmp.eq.s32.totalorder %s27, 0
    %p331 = por %p329, %p330
    %p332 = scmp.ne.s32.totalorder %s318, %s319
    %p333 = scmp.eq.s32.totalorder %s28, 15
    %p334 = por %p332, %p333
    %p336 = scmp.ne.s32.totalorder %s319, %s335
    %p337 = scmp.eq.s32.totalorder %s28, 0
    %p338 = por %p336, %p337
    %s339 = ssub.s32 %s30, %s37
    %p340 = scmp.eq.s32.totalorder %s339, 0
    %s342 = sadd.s32 %s341, 1
    %s343 = scalar_select %p340, %s341, %s342
    %p346 = pneg %p340
    %p347 = scmp.eq.s32.totalorder %s22, 15
    %p348 = por %p346, %p347
    %p349 = scmp.ne.s32.totalorder %s341, %s344
    %p350 = scmp.eq.s32.totalorder %s22, 0
    %p351 = por %p349, %p350
    %p352 = scmp.ne.s32.totalorder %s341, %s344
    %p353 = scmp.eq.s32.totalorder %s27, 15
    %p354 = por %p352, %p353
    %p355 = scmp.ne.s32.totalorder %s344, %s345
    %p356 = scmp.eq.s32.totalorder %s27, 0
    %p357 = por %p355, %p356
    %p358 = scmp.ne.s32.totalorder %s344, %s345
    %p359 = scmp.eq.s32.totalorder %s28, 15
    %p360 = por %p358, %p359
    %p362 = scmp.ne.s32.totalorder %s345, %s361
    %p363 = scmp.eq.s32.totalorder %s28, 0
    %p364 = por %p362, %p363
    %s365 = ssub.s32 %s30, %s37
    %p366 = scmp.eq.s32.totalorder %s365, 0
    %s368 = sadd.s32 %s367, 1
    %s369 = scalar_select %p366, %s367, %s368
    %p372 = pneg %p366
    %p373 = scmp.eq.s32.totalorder %s22, 15
    %p374 = por %p372, %p373
    %p375 = scmp.ne.s32.totalorder %s367, %s370
    %p376 = scmp.eq.s32.totalorder %s22, 0
    %p377 = por %p375, %p376
    %p378 = scmp.ne.s32.totalorder %s367, %s370
    %p379 = scmp.eq.s32.totalorder %s27, 15
    %p380 = por %p378, %p379
    %p381 = scmp.ne.s32.totalorder %s370, %s371
    %p382 = scmp.eq.s32.totalorder %s27, 0
    %p383 = por %p381, %p382
    %p384 = scmp.ne.s32.totalorder %s370, %s371
    %p385 = scmp.eq.s32.totalorder %s28, 15
    %p386 = por %p384, %p385
    %p388 = scmp.ne.s32.totalorder %s371, %s387
    %p389 = scmp.eq.s32.totalorder %s28, 0
    %p390 = por %p388, %p389
    %s391 = ssub.s32 %s30, %s37
    %p392 = scmp.eq.s32.totalorder %s391, 0
    %s394 = sadd.s32 %s393, 1
    %s395 = scalar_select %p392, %s393, %s394
    %p398 = pneg %p392
    %p399 = scmp.eq.s32.totalorder %s22, 15
    %p400 = por %p398, %p399
    %p401 = scmp.ne.s32.totalorder %s393, %s396
    %p402 = scmp.eq.s32.totalorder %s22, 0
    %p403 = por %p401, %p402
    %p404 = scmp.ne.s32.totalorder %s393, %s396
    %p405 = scmp.eq.s32.totalorder %s27, 15
    %p406 = por %p404, %p405
    %p407 = scmp.ne.s32.totalorder %s396, %s397
    %p408 = scmp.eq.s32.totalorder %s27, 0
    %p409 = por %p407, %p408
    %p410 = scmp.ne.s32.totalorder %s396, %s397
    %p411 = scmp.eq.s32.totalorder %s28, 15
    %p412 = por %p410, %p411
    %p414 = scmp.ne.s32.totalorder %s397, %s413
    %p415 = scmp.eq.s32.totalorder %s28, 0
    %p416 = por %p414, %p415
    %s417 = ssub.s32 %s30, %s37
    %p418 = scmp.eq.s32.totalorder %s417, 0
    %s420 = sadd.s32 %s419, 1
    %s421 = scalar_select %p418, %s419, %s420
    %p424 = pneg %p418
    %p425 = scmp.eq.s32.totalorder %s22, 15
    %p426 = por %p424, %p425
    %p427 = scmp.ne.s32.totalorder %s419, %s422
    %p428 = scmp.eq.s32.totalorder %s22, 0
    %p429 = por %p427, %p428
    %p430 = scmp.ne.s32.totalorder %s419, %s422
    %p431 = scmp.eq.s32.totalorder %s27, 15
    %p432 = por %p430, %p431
    %p433 = scmp.ne.s32.totalorder %s422, %s423
    %p434 = scmp.eq.s32.totalorder %s27, 0
    %p435 = por %p433, %p434
    %p436 = scmp.ne.s32.totalorder %s422, %s423
    %p437 = scmp.eq.s32.totalorder %s28, 15
    %p438 = por %p436, %p437
    %p440 = scmp.ne.s32.totalorder %s423, %s439
    %p441 = scmp.eq.s32.totalorder %s28, 0
    %p442 = por %p440, %p441
    %s443 = ssub.s32 %s29, %s41
    %p444 = scmp.eq.s32.totalorder %s443, 0
    %s446 = sadd.s32 %s445, 1
    %s447 = scalar_select %p444, %s445, %s446
    %p450 = pneg %p444
    %p451 = scmp.eq.s32.totalorder %s22, 15
    %p452 = por %p450, %p451
    %p453 = scmp.ne.s32.totalorder %s445, %s448
    %p454 = scmp.eq.s32.totalorder %s22, 0
    %p455 = por %p453, %p454
    %p456 = scmp.ne.s32.totalorder %s445, %s448
    %p457 = scmp.eq.s32.totalorder %s27, 15
    %p458 = por %p456, %p457
    %p459 = scmp.ne.s32.totalorder %s448, %s449
    %p460 = scmp.eq.s32.totalorder %s27, 0
    %p461 = por %p459, %p460
    %p462 = scmp.ne.s32.totalorder %s448, %s449
    %p463 = scmp.eq.s32.totalorder %s28, 15
    %p464 = por %p462, %p463
    %p466 = scmp.ne.s32.totalorder %s449, %s465
    %p467 = scmp.eq.s32.totalorder %s28, 0
    %p468 = por %p466, %p467
    %p469 = scmp.le.s32.totalorder 1, %s22
    %p470 = scmp.lt.s32.totalorder %s22, 17
    %p471 = pnand %p469, %p470
    %p472 = pneg %p471
    // Predicated region
    $region9: #{actor_forward.2} parent=5 // pred_check
      _
    $region10: #{actor_forward.2} parent=5 // pred_check_branch
      %474 = sbr.rel (%p471) target = $region12
    $region11: #{actor_forward.2} parent=5 // pred_region
      %s475 = ssub.s32 %s22, 1
      // Predicated region
      $region13: #{actor_forward.2} parent=11 // pred_check
        %p476 = pneg %p81
      $region14: #{actor_forward.2} parent=11 // pred_check_branch
        %478 = sbr.rel (%p476) target = $region16
      $region15: #{actor_forward.2} parent=11 // pred_region
        _
      $region16: #{actor_forward.2} parent=11 // pred_fallthru
        _
      // Predicated region
      $region17: #{actor_forward.2} parent=11 // pred_check
        %p479 = pneg %p102
      $region18: #{actor_forward.2} parent=11 // pred_check_branch
        %481 = sbr.rel (%p479) target = $region20
      $region19: #{actor_forward.2} parent=11 // pred_region
        _
      $region20: #{actor_forward.2} parent=11 // pred_fallthru
        _
      // Predicated region
      $region21: #{actor_forward.2} parent=11 // pred_check
        %p482 = pneg %p123
      $region22: #{actor_forward.2} parent=11 // pred_check_branch
        %484 = sbr.rel (%p482) target = $region24
      $region23: #{actor_forward.2} parent=11 // pred_region
        _
      $region24: #{actor_forward.2} parent=11 // pred_fallthru
        _
    $region12: #{actor_forward.2} parent=5 // pred_fallthru
      _
    %p485 = scmp.lt.s32.totalorder %s22, 16
    // Predicated region
    $region25: #{actor_forward.2} parent=5 // pred_check
      %p486 = pneg %p485
    $region26: #{actor_forward.2} parent=5 // pred_check_branch
      %488 = sbr.rel (%p486) target = $region28
    $region27: #{actor_forward.2} parent=5 // pred_region
      // Predicated region
      $region29: #{actor_forward.2} parent=27 // pred_check
        %p489 = pneg %p54
      $region30: #{actor_forward.2} parent=27 // pred_check_branch
        %491 = sbr.rel (%p489) target = $region32
      $region31: #{actor_forward.2} parent=27 // pred_region
        %p492 = scmp.lt.s32.totalorder %s29, 1
        %s493 = scalar_select %p492, %s29, 1
        %s494 = smul.addr %s493, 2
        %s495 = smul.addr %s494, 8
        %s496 = scalar_lea.vmem %s0, %s495
      $region32: #{actor_forward.2} parent=27 // pred_fallthru
        _
      // Predicated region
      $region33: #{actor_forward.2} parent=27 // pred_check
        %p497 = pneg %p143
      $region34: #{actor_forward.2} parent=27 // pred_check_branch
        %499 = sbr.rel (%p497) target = $region36
      $region35: #{actor_forward.2} parent=27 // pred_region
        %p500 = scmp.lt.s32.totalorder %s30, 7
        %s501 = scalar_select %p500, %s30, 7
        %s502 = scalar_lea.vmem %s4, %s501
      $region36: #{actor_forward.2} parent=27 // pred_fallthru
        _
      // Predicated region
      $region37: #{actor_forward.2} parent=27 // pred_check
        %p503 = pneg %p169
      $region38: #{actor_forward.2} parent=27 // pred_check_branch
        %505 = sbr.rel (%p503) target = $region40
      $region39: #{actor_forward.2} parent=27 // pred_region
        %p506 = scmp.lt.s32.totalorder %s30, 7
        %s507 = scalar_select %p506, %s30, 7
        %s508 = scalar_lea.vmem %s5, %s507
      $region40: #{actor_forward.2} parent=27 // pred_fallthru
        _
      // Predicated region
      $region41: #{actor_forward.2} parent=27 // pred_check
        %p509 = pneg %p195
      $region42: #{actor_forward.2} parent=27 // pred_check_branch
        %511 = sbr.rel (%p509) target = $region44
      $region43: #{actor_forward.2} parent=27 // pred_region
        %p512 = scmp.lt.s32.totalorder %s30, 7
        %s513 = scalar_select %p512, %s30, 7
        %s514 = smul.addr %s513, 4
        %s515 = smul.addr %s514, 4
        %s516 = scalar_lea.vmem %s6, %s515
      $region44: #{actor_forward.2} parent=27 // pred_fallthru
        _
      // Predicated region
      $region45: #{actor_forward.2} parent=27 // pred_check
        %p517 = pneg %p221
      $region46: #{actor_forward.2} parent=27 // pred_check_branch
        %519 = sbr.rel (%p517) target = $region48
      $region47: #{actor_forward.2} parent=27 // pred_region
        %p520 = scmp.lt.s32.totalorder %s30, 7
        %s521 = scalar_select %p520, %s30, 7
        %s522 = scalar_lea.vmem %s7, %s521
      $region48: #{actor_forward.2} parent=27 // pred_fallthru
        _
      // Predicated region
      $region49: #{actor_forward.2} parent=27 // pred_check
        %p523 = pneg %p247
      $region50: #{actor_forward.2} parent=27 // pred_check_branch
        %525 = sbr.rel (%p523) target = $region52
      $region51: #{actor_forward.2} parent=27 // pred_region
        %p526 = scmp.lt.s32.totalorder %s30, 7
        %s527 = scalar_select %p526, %s30, 7
        %s528 = smul.addr %s527, 4
        %s529 = smul.addr %s528, 4
        %s530 = scalar_lea.vmem %s8, %s529
      $region52: #{actor_forward.2} parent=27 // pred_fallthru
        _
      // Predicated region
      $region53: #{actor_forward.2} parent=27 // pred_check
        %p531 = pneg %p273
      $region54: #{actor_forward.2} parent=27 // pred_check_branch
        %533 = sbr.rel (%p531) target = $region56
      $region55: #{actor_forward.2} parent=27 // pred_region
        %p534 = scmp.lt.s32.totalorder %s30, 7
        %s535 = scalar_select %p534, %s30, 7
        %s536 = scalar_lea.vmem %s9, %s535
      $region56: #{actor_forward.2} parent=27 // pred_fallthru
        _
      // Predicated region
      $region57: #{actor_forward.2} parent=27 // pred_check
        %p537 = pneg %p299
      $region58: #{actor_forward.2} parent=27 // pred_check_branch
        %539 = sbr.rel (%p537) target = $region60
      $region59: #{actor_forward.2} parent=27 // pred_region
        %p540 = scmp.lt.s32.totalorder %s30, 7
        %s541 = scalar_select %p540, %s30, 7
        %s542 = scalar_lea.vmem %s10, %s541
      $region60: #{actor_forward.2} parent=27 // pred_fallthru
        _
      // Predicated region
      $region61: #{actor_forward.2} parent=27 // pred_check
        %p543 = pneg %p325
      $region62: #{actor_forward.2} parent=27 // pred_check_branch
        %545 = sbr.rel (%p543) target = $region64
      $region63: #{actor_forward.2} parent=27 // pred_region
        %p546 = scmp.lt.s32.totalorder %s30, 7
        %s547 = scalar_select %p546, %s30, 7
        %s548 = scalar_lea.vmem %s11, %s547
      $region64: #{actor_forward.2} parent=27 // pred_fallthru
        _
      // Predicated region
      $region65: #{actor_forward.2} parent=27 // pred_check
        %p549 = pneg %p351
      $region66: #{actor_forward.2} parent=27 // pred_check_branch
        %551 = sbr.rel (%p549) target = $region68
      $region67: #{actor_forward.2} parent=27 // pred_region
        %p552 = scmp.lt.s32.totalorder %s30, 7
        %s553 = scalar_select %p552, %s30, 7
        %s554 = smul.addr %s553, 4
        %s555 = smul.addr %s554, 4
        %s556 = scalar_lea.vmem %s12, %s555
      $region68: #{actor_forward.2} parent=27 // pred_fallthru
        _
      // Predicated region
      $region69: #{actor_forward.2} parent=27 // pred_check
        %p557 = pneg %p377
      $region70: #{actor_forward.2} parent=27 // pred_check_branch
        %559 = sbr.rel (%p557) target = $region72
      $region71: #{actor_forward.2} parent=27 // pred_region
        %p560 = scmp.lt.s32.totalorder %s30, 7
        %s561 = scalar_select %p560, %s30, 7
        %s562 = scalar_lea.vmem %s13, %s561
      $region72: #{actor_forward.2} parent=27 // pred_fallthru
        _
      // Predicated region
      $region73: #{actor_forward.2} parent=27 // pred_check
        %p563 = pneg %p403
      $region74: #{actor_forward.2} parent=27 // pred_check_branch
        %565 = sbr.rel (%p563) target = $region76
      $region75: #{actor_forward.2} parent=27 // pred_region
        %p566 = scmp.lt.s32.totalorder %s30, 7
        %s567 = scalar_select %p566, %s30, 7
        %s568 = smul.addr %s567, 16
        %s569 = smul.addr %s568, 4
        %s570 = scalar_lea.vmem %s14, %s569
      $region76: #{actor_forward.2} parent=27 // pred_fallthru
        _
      // Predicated region
      $region77: #{actor_forward.2} parent=27 // pred_check
        %p571 = pneg %p429
      $region78: #{actor_forward.2} parent=27 // pred_check_branch
        %573 = sbr.rel (%p571) target = $region80
      $region79: #{actor_forward.2} parent=27 // pred_region
        %p574 = scmp.lt.s32.totalorder %s30, 7
        %s575 = scalar_select %p574, %s30, 7
        %s576 = scalar_lea.vmem %s15, %s575
      $region80: #{actor_forward.2} parent=27 // pred_fallthru
        _
    $region28: #{actor_forward.2} parent=5 // pred_fallthru
      _
    %p577 = scmp.le.s32.totalorder 1, %s22
    %p578 = scmp.lt.s32.totalorder %s22, 17
    %p579 = pnand %p577, %p578
    %p580 = pneg %p579
    // Predicated region
    $region81: #{actor_forward.2} parent=5 // pred_check
      _
    $region82: #{actor_forward.2} parent=5 // pred_check_branch
      %582 = sbr.rel (%p579) target = $region84
    $region83: #{actor_forward.2} parent=5 // pred_region
      %s583 = ssub.s32 %s22, 1
      %p584 = scmp.lt.s32.totalorder %s31, 1
      %s585 = scalar_select %p584, %s31, 1
      %s586 = smul.addr %s585, 2
      %s587 = smul.addr %s586, 8
      %s588 = scalar_lea.vmem %s0, %s587
      %p589 = pneg %p60
      %p590 = pneg %p57
      %p591 = pneg %p81
      %p592 = pneg %p78
      %p593 = pneg %p102
      %p594 = pneg %p99
      %p595 = pneg %p123
      %p596 = pneg %p120
      %p597 = scmp.lt.s32.totalorder %s32, 7
      %s598 = scalar_select %p597, %s32, 7
      %s599 = scalar_lea.vmem %s4, %s598
      %p600 = pneg %p149
      %p601 = pneg %p146
      %p602 = scmp.lt.s32.totalorder %s32, 7
      %s603 = scalar_select %p602, %s32, 7
      %s604 = scalar_lea.vmem %s5, %s603
      %p605 = pneg %p175
      %p606 = pneg %p172
      %p607 = scmp.lt.s32.totalorder %s32, 7
      %s608 = scalar_select %p607, %s32, 7
      %s609 = smul.addr %s608, 4
      %s610 = smul.addr %s609, 4
      %s611 = scalar_lea.vmem %s6, %s610
      %p612 = pneg %p201
      %p613 = pneg %p198
      %p614 = scmp.lt.s32.totalorder %s32, 7
      %s615 = scalar_select %p614, %s32, 7
      %s616 = scalar_lea.vmem %s7, %s615
      %p617 = pneg %p227
      %p618 = pneg %p224
      %p619 = scmp.lt.s32.totalorder %s32, 7
      %s620 = scalar_select %p619, %s32, 7
      %s621 = smul.addr %s620, 4
      %s622 = smul.addr %s621, 4
      %s623 = scalar_lea.vmem %s8, %s622
      %p624 = pneg %p253
      %p625 = pneg %p250
      %p626 = scmp.lt.s32.totalorder %s32, 7
      %s627 = scalar_select %p626, %s32, 7
      %s628 = scalar_lea.vmem %s9, %s627
      %p629 = pneg %p279
      %p630 = pneg %p276
      %p631 = scmp.lt.s32.totalorder %s32, 7
      %s632 = scalar_select %p631, %s32, 7
      %s633 = scalar_lea.vmem %s10, %s632
      %p634 = pneg %p305
      %p635 = pneg %p302
      %p636 = scmp.lt.s32.totalorder %s32, 7
      %s637 = scalar_select %p636, %s32, 7
      %s638 = scalar_lea.vmem %s11, %s637
      %p639 = pneg %p331
      %p640 = pneg %p328
      %p641 = scmp.lt.s32.totalorder %s32, 7
      %s642 = scalar_select %p641, %s32, 7
      %s643 = smul.addr %s642, 4
      %s644 = smul.addr %s643, 4
      %s645 = scalar_lea.vmem %s12, %s644
      %p646 = pneg %p357
      %p647 = pneg %p354
      %p648 = scmp.lt.s32.totalorder %s32, 7
      %s649 = scalar_select %p648, %s32, 7
      %s650 = scalar_lea.vmem %s13, %s649
      %p651 = pneg %p383
      %p652 = pneg %p380
      %p653 = scmp.lt.s32.totalorder %s32, 7
      %s654 = scalar_select %p653, %s32, 7
      %s655 = smul.addr %s654, 16
      %s656 = smul.addr %s655, 4
      %s657 = scalar_lea.vmem %s14, %s656
      %p658 = pneg %p409
      %p659 = pneg %p406
      %p660 = scmp.lt.s32.totalorder %s32, 7
      %s661 = scalar_select %p660, %s32, 7
      %s662 = scalar_lea.vmem %s15, %s661
      %p663 = pneg %p435
      %p664 = pneg %p432
      %p665 = pneg %p461
      %p666 = pneg %p458
      %p667 = scmp.lt.s32.totalorder %s31, 1
      %s668 = scalar_select %p667, %s31, 1
      %s669 = smul.addr %s668, 2
      %s670 = smul.addr %s669, 8
      %s671 = scalar_lea.vmem %s16, %s670
      %p672 = scmp.lt.s32.totalorder %s31, 1
      %s673 = scalar_select %p672, %s31, 1
      %s674 = smul.addr %s673, 2
      %s675 = smul.addr %s674, 8
      %s676 = scalar_lea.vmem %s0, %s675
      %p677 = scmp.lt.s32.totalorder %s32, 7
      %s678 = scalar_select %p677, %s32, 7
      %s679 = scalar_lea.vmem %s4, %s678
      %p680 = scmp.lt.s32.totalorder %s32, 7
      %s681 = scalar_select %p680, %s32, 7
      %s682 = scalar_lea.vmem %s5, %s681
      %p683 = scmp.lt.s32.totalorder %s32, 7
      %s684 = scalar_select %p683, %s32, 7
      %s685 = smul.addr %s684, 4
      %s686 = smul.addr %s685, 4
      %s687 = scalar_lea.vmem %s6, %s686
      %p688 = scmp.lt.s32.totalorder %s32, 7
      %s689 = scalar_select %p688, %s32, 7
      %s690 = scalar_lea.vmem %s7, %s689
      %p691 = scmp.lt.s32.totalorder %s32, 7
      %s692 = scalar_select %p691, %s32, 7
      %s693 = smul.addr %s692, 4
      %s694 = smul.addr %s693, 4
      %s695 = scalar_lea.vmem %s8, %s694
      %p696 = scmp.lt.s32.totalorder %s32, 7
      %s697 = scalar_select %p696, %s32, 7
      %s698 = scalar_lea.vmem %s9, %s697
      %p699 = scmp.lt.s32.totalorder %s32, 7
      %s700 = scalar_select %p699, %s32, 7
      %s701 = scalar_lea.vmem %s10, %s700
      %p702 = scmp.lt.s32.totalorder %s32, 7
      %s703 = scalar_select %p702, %s32, 7
      %s704 = scalar_lea.vmem %s11, %s703
      %p705 = scmp.lt.s32.totalorder %s32, 7
      %s706 = scalar_select %p705, %s32, 7
      %s707 = smul.addr %s706, 4
      %s708 = smul.addr %s707, 4
      %s709 = scalar_lea.vmem %s12, %s708
      %p710 = scmp.lt.s32.totalorder %s32, 7
      %s711 = scalar_select %p710, %s32, 7
      %s712 = scalar_lea.vmem %s13, %s711
      %p713 = scmp.lt.s32.totalorder %s32, 7
      %s714 = scalar_select %p713, %s32, 7
      %s715 = smul.addr %s714, 16
      %s716 = smul.addr %s715, 4
      %s717 = scalar_lea.vmem %s14, %s716
      %p718 = scmp.lt.s32.totalorder %s32, 7
      %s719 = scalar_select %p718, %s32, 7
      %s720 = scalar_lea.vmem %s15, %s719
      %p721 = scmp.lt.s32.totalorder %s31, 1
      %s722 = scalar_select %p721, %s31, 1
      %s723 = smul.addr %s722, 2
      %s724 = smul.addr %s723, 8
      %s725 = scalar_lea.vmem %s16, %s724
      %p727 = scmp.eq.s32.totalorder %s32, 0
      // Predicated region
      $region85: #{actor_forward.2} parent=83 // pred_check
        %p728 = pneg %p727
      $region86: #{actor_forward.2} parent=83 // pred_check_branch
        %730 = sbr.rel (%p728) target = $region88
      $region87: #{actor_forward.2} parent=83 // pred_region
        %v731 = vld [vmem:[%s676] sm:$0xff]
        %v732 = vld [vmem:[%s676 + $0x8] sm:$0xff]
        %v733 = vpack.c.bf16 %v732, %v731
        %v734 = vld [vmem:[%s1] sm:$0xf]
        %v735 = vld [vmem:[%s1 + $0x4] sm:$0xf]
        %v736 = vld [vmem:[%s1 + $0x8] sm:$0xf]
        %v737 = vld [vmem:[%s1 + $0xc] sm:$0xf]
        %v738 = vld [vmem:[%s2] sm:$0x1]
        %v740 = vlaneseq
        %v741 = vshrl.u32 %v740, 7
        %v742 = vsub.s32 0, %v741
        %v743 = vrot.slane %v738, %v742
        %v749 = vunpack.c.l.b16 %v734
        %v750 = vunpack.c.l.b16 %v735
        %v751 = vunpack.c.l.b16 %v736
        %v752 = vunpack.c.l.b16 %v737
        %v753 = vpack.c.b16 %v750, %v749
        %v754 = vpack.c.b16 %v752, %v751
        %vm757 = vcmask 261120
        %v759 = vsel %vm757, %v733, 0
        %761 = vmatprep.subr.bf16.mxu0 0
        %762 = vmatpush1.bf16.msra.mxu0 %v753
        %763 = vmatprep.subr.bf16.mxu0 0
        %764 = vmatpush1.bf16.msra.mxu0 %v754
        %765 = vmatprep.subr.bf16.mxu0 0
        %766 = vmatpush1.bf16.msra.mxu0 0
        %767 = vmatprep.subr.bf16.mxu0 0
        %768 = vmatpush1.bf16.msra.mxu0 0
        %769 = vmatprep.subr.bf16.mxu0 0
        %770 = vmatpush1.bf16.msra.mxu0 0
        %771 = vmatprep.subr.bf16.mxu0 0
        %772 = vmatpush1.bf16.msra.mxu0 0
        %773 = vmatprep.subr.bf16.mxu0 0
        %774 = vmatpush1.bf16.msra.mxu0 0
        %775 = vmatprep.subr.bf16.mxu0 0
        %776 = vmatpush1.bf16.msra.mxu0 0
        %777 = vmatprep.subr.bf16.mxu0 0
        %778 = vmatpush1.bf16.msra.mxu0 0
        %779 = vmatprep.subr.bf16.mxu0 0
        %780 = vmatpush1.bf16.msra.mxu0 0
        %781 = vmatprep.subr.bf16.mxu0 0
        %782 = vmatpush1.bf16.msra.mxu0 0
        %783 = vmatprep.subr.bf16.mxu0 0
        %784 = vmatpush1.bf16.msra.mxu0 0
        %785 = vmatprep.subr.bf16.mxu0 0
        %786 = vmatpush1.bf16.msra.mxu0 0
        %787 = vmatprep.subr.bf16.mxu0 0
        %788 = vmatpush1.bf16.msra.mxu0 0
        %789 = vmatprep.subr.bf16.mxu0 0
        %790 = vmatpush1.bf16.msra.mxu0 0
        %791 = vmatprep.subr.bf16.mxu0 0
        %792 = vmatpush1.bf16.msra.mxu0 0
        %793 = vmatprep.mubr.bf16.mxu0 0
        %794 = vmatmul.mubr.bf16.gmra.mrb[0].mxu0 %v759
        %v795 = vpop.f32.mrb[0].mxu0
        %v796 = vadd.f32 %v743, %v795
        %v797 = vpop.f32.mrb[0].mxu0
        %v798 = vpop.f32.mrb[0].mxu0
        %v799 = vadd.f32 %v743, %v798
        %v800 = vpop.f32.mrb[0].mxu0
        %801 = vdwg.mxu0
        %v802 = vld [vmem:[%s3] sm:$0xff]
        %v803 = vld [vmem:[%s3 + $0x8] sm:$0xff]
        %v804 = vadd.f32 %v796, %v802
        %v805 = vadd.f32 %v799, %v803
        %806 = vst.msk [vmem:[%s725] sm:$0xff] %vm757, %v804
        %807 = vst.msk [vmem:[%s725 + $0x8] sm:$0xff] %vm757, %v805
      $region88: #{actor_forward.2} parent=83 // pred_fallthru
        _
      %v808 = vld [vmem:[%s725] sm:$0xff]
      %v809 = vld [vmem:[%s725 + $0x8] sm:$0xff]
      %v810 = vld [vmem:[%s679] sm:$0x1]
      %v811 = vld [vmem:[%s682] sm:$0x1]
      %vm812 = vcmask 261120
      %v813 = vsel %vm812, %v808, 0.0
      %814 = vadd.xlane.f32.xlu0 %v813
      %v815 = vpop.xlane.xlu0 %814
      %v816 = vsel %vm812, %v809, 0.0
      %817 = vadd.xlane.f32.xlu0 %v816
      %v818 = vpop.xlane.xlu0 %817
      %v819 = vrcp.pop 32.0
      %v820 = vmul.f32 %v815, %v819
      %v821 = vmul.f32 %v818, %v819
      %v822 = vsub.f32 %v808, %v820
      %v823 = vsub.f32 %v809, %v821
      %v824 = vmul.f32 %v822, %v822
      %v825 = vmul.f32 %v823, %v823
      %v826 = vsel %vm812, %v824, 0.0
      %827 = vadd.xlane.f32.xlu0 %v826
      %v828 = vpop.xlane.xlu0 %827
      %v829 = vsel %vm812, %v825, 0.0
      %830 = vadd.xlane.f32.xlu0 %v829
      %v831 = vpop.xlane.xlu0 %830
      %v832 = vmul.f32 %v828, %v819
      %v833 = vmul.f32 %v831, %v819
      %v834 = vadd.f32 %v832, 1e-05
      %v835 = vadd.f32 %v833, 1e-05
      %v836 = vrsqrt.pop %v834
      %v837 = vrsqrt.pop %v835
      %v838 = vmul.f32 %v822, %v836
      %v839 = vmul.f32 %v823, %v837
      %v841 = vlaneseq
      %v842 = vshrl.u32 %v841, 7
      %v843 = vsub.s32 0, %v842
      %v844 = vrot.slane %v810, %v843
      %v846 = vmul.f32 %v838, %v844
      %v847 = vmul.f32 %v839, %v844
      %v849 = vlaneseq
      %v850 = vshrl.u32 %v849, 7
      %v851 = vsub.s32 0, %v850
      %v852 = vrot.slane %v811, %v851
      %v854 = vadd.f32 %v846, %v852
      %v855 = vadd.f32 %v847, %v852
      %v856 = vpack.c.bf16 %v855, %v854
      %v857 = vld [vmem:[%s687] sm:$0xf]
      %v858 = vld [vmem:[%s687 + $0x4] sm:$0xf]
      %v859 = vld [vmem:[%s687 + $0x8] sm:$0xf]
      %v860 = vld [vmem:[%s687 + $0xc] sm:$0xf]
      %v861 = vld [vmem:[%s690] sm:$0x1]
      %v863 = vlaneseq
      %v864 = vshrl.u32 %v863, 7
      %v865 = vsub.s32 0, %v864
      %v866 = vrot.slane %v861, %v865
      %v872 = vunpack.c.l.b16 %v857
      %v873 = vunpack.c.l.b16 %v858
      %v874 = vunpack.c.l.b16 %v859
      %v875 = vunpack.c.l.b16 %v860
      %v876 = vpack.c.b16 %v873, %v872
      %v877 = vpack.c.b16 %v875, %v874
      %v881 = vsel %vm812, %v856, 0
      %883 = vmatprep.subr.bf16.mxu0 0
      %884 = vmatpush1.bf16.msra.mxu0 %v876
      %885 = vmatprep.subr.bf16.mxu0 0
      %886 = vmatpush1.bf16.msra.mxu0 %v877
      %887 = vmatprep.subr.bf16.mxu0 0
      %888 = vmatpush1.bf16.msra.mxu0 0
      %889 = vmatprep.subr.bf16.mxu0 0
      %890 = vmatpush1.bf16.msra.mxu0 0
      %891 = vmatprep.subr.bf16.mxu0 0
      %892 = vmatpush1.bf16.msra.mxu0 0
      %893 = vmatprep.subr.bf16.mxu0 0
      %894 = vmatpush1.bf16.msra.mxu0 0
      %895 = vmatprep.subr.bf16.mxu0 0
      %896 = vmatpush1.bf16.msra.mxu0 0
      %897 = vmatprep.subr.bf16.mxu0 0
      %898 = vmatpush1.bf16.msra.mxu0 0
      %899 = vmatprep.subr.bf16.mxu0 0
      %900 = vmatpush1.bf16.msra.mxu0 0
      %901 = vmatprep.subr.bf16.mxu0 0
      %902 = vmatpush1.bf16.msra.mxu0 0
      %903 = vmatprep.subr.bf16.mxu0 0
      %904 = vmatpush1.bf16.msra.mxu0 0
      %905 = vmatprep.subr.bf16.mxu0 0
      %906 = vmatpush1.bf16.msra.mxu0 0
      %907 = vmatprep.subr.bf16.mxu0 0
      %908 = vmatpush1.bf16.msra.mxu0 0
      %909 = vmatprep.subr.bf16.mxu0 0
      %910 = vmatpush1.bf16.msra.mxu0 0
      %911 = vmatprep.subr.bf16.mxu0 0
      %912 = vmatpush1.bf16.msra.mxu0 0
      %913 = vmatprep.subr.bf16.mxu0 0
      %914 = vmatpush1.bf16.msra.mxu0 0
      %915 = vmatprep.mubr.bf16.mxu0 0
      %916 = vmatmul.mubr.bf16.gmra.mrb[0].mxu0 %v881
      %v917 = vpop.f32.mrb[0].mxu0
      %v918 = vadd.f32 %v866, %v917
      %v919 = vpop.f32.mrb[0].mxu0
      %v920 = vpop.f32.mrb[0].mxu0
      %v921 = vadd.f32 %v866, %v920
      %v922 = vpop.f32.mrb[0].mxu0
      %923 = vdwg.mxu0
      %v924 = vlaneseq
      %v925 = vshrl.u32 %v924, 7
      %v926 = vadd.s32 %v925, 8
      %v927 = vlaneseq
      %v928 = vand.u32 %v927, 127
      %vm929 = vcmp.le.s32.totalorder %v928, %v925
      %vm930 = vcmp.le.s32.totalorder %v928, %v926
      %v931 = vpack.c.bf16 %v921, %v918
      %933 = vrot.lane.b32.xlu0 %v931, 96
      %v934 = vpop.permute.xlu0 %933
      %vm935 = vcmask 64512
      %v937 = vsel %vm935, %v931, 0
      %v940 = vsel %vm935, %v934, 0
      %942 = vmatprep.subr.bf16.mxu0 0
      %943 = vmatpush1.bf16.xpose.msra.mxu0 %v940
      %944 = vmatprep.subr.bf16.mxu0 0
      %945 = vmatpush1.bf16.xpose.msra.mxu0 0
      %946 = vmatprep.subr.bf16.mxu0 0
      %947 = vmatpush1.bf16.xpose.msra.mxu0 0
      %948 = vmatprep.subr.bf16.mxu0 0
      %949 = vmatpush1.bf16.xpose.msra.mxu0 0
      %950 = vmatprep.subr.bf16.mxu0 0
      %951 = vmatpush1.bf16.xpose.msra.mxu0 0
      %952 = vmatprep.subr.bf16.mxu0 0
      %953 = vmatpush1.bf16.xpose.msra.mxu0 0
      %954 = vmatprep.subr.bf16.mxu0 0
      %955 = vmatpush1.bf16.xpose.msra.mxu0 0
      %956 = vmatprep.subr.bf16.mxu0 0
      %957 = vmatpush1.bf16.xpose.msra.mxu0 0
      %958 = vmatprep.subr.bf16.mxu0 0
      %959 = vmatpush1.bf16.xpose.msra.mxu0 0
      %960 = vmatprep.subr.bf16.mxu0 0
      %961 = vmatpush1.bf16.xpose.msra.mxu0 0
      %962 = vmatprep.subr.bf16.mxu0 0
      %963 = vmatpush1.bf16.xpose.msra.mxu0 0
      %964 = vmatprep.subr.bf16.mxu0 0
      %965 = vmatpush1.bf16.xpose.msra.mxu0 0
      %966 = vmatprep.subr.bf16.mxu0 0
      %967 = vmatpush1.bf16.xpose.msra.mxu0 0
      %968 = vmatprep.subr.bf16.mxu0 0
      %969 = vmatpush1.bf16.xpose.msra.mxu0 0
      %970 = vmatprep.subr.bf16.mxu0 0
      %971 = vmatpush1.bf16.xpose.msra.mxu0 0
      %972 = vmatprep.subr.bf16.mxu0 0
      %973 = vmatpush1.bf16.xpose.msra.mxu0 0
      %974 = vmatprep.mubr.bf16.mxu0 0
      %975 = vmatmul.mubr.bf16.gmra.mrb[0].mxu0 %v937
      %v976 = vpop.f32.mrb[0].mxu0
      %v977 = vadd.f32 0.0, %v976
      %v978 = vpop.f32.mrb[0].mxu0
      %v979 = vpop.f32.mrb[0].mxu0
      %v980 = vadd.f32 0.0, %v979
      %v981 = vpop.f32.mrb[0].mxu0
      %982 = vdwg.mxu0
      %v983 = vmul.f32 %v977, 0.35355338
      %v984 = vmul.f32 %v980, 0.35355338
      %v985 = vsel %vm929, %v983, -1e+30
      %v986 = vsel %vm930, %v984, -1e+30
      %vm987 = vcmask 130048
      %v988 = vsel %vm987, %v985, -inf
      %989 = vmax.xlane.f32.xlu0 %v988
      %v990 = vpop.xlane.xlu0 %989
      %v991 = vsel %vm987, %v986, -inf
      %992 = vmax.xlane.f32.xlu0 %v991
      %v993 = vpop.xlane.xlu0 %992
      %v994 = vsub.f32 %v985, %v990
      %v995 = vsub.f32 %v986, %v993
      %v996 = vmul.f32 %v994, 1.442695
      %v997 = vpow.pop %v996
      %v998 = vmul.f32 %v995, 1.442695
      %v999 = vpow.pop %v998
      %v1000 = vsel %vm987, %v997, 0.0
      %1001 = vadd.xlane.f32.xlu0 %v1000
      %v1002 = vpop.xlane.xlu0 %1001
      %v1003 = vsel %vm987, %v999, 0.0
      %1004 = vadd.xlane.f32.xlu0 %v1003
      %v1005 = vpop.xlane.xlu0 %1004
      %v1006 = vrcp.pop %v1002
      %v1007 = vmul.f32 %v997, %v1006
      %v1008 = vrcp.pop %v1005
      %v1009 = vmul.f32 %v999, %v1008
      %v1010 = vpack.c.bf16 %v1009, %v1007
      %1011 = vrot.lane.b32.xlu0 %v931, 64
      %v1012 = vpop.permute.xlu0 %1011
      %v1015 = vsel %vm987, %v1010, 0
      %1017 = vmatprep.subr.bf16.mxu0 0
      %1018 = vmatpush1.bf16.msra.mxu0 %v1012
      %1019 = vmatprep.subr.bf16.mxu0 0
      %1020 = vmatpush1.bf16.msra.mxu0 0
      %1021 = vmatprep.subr.bf16.mxu0 0
      %1022 = vmatpush1.bf16.msra.mxu0 0
      %1023 = vmatprep.subr.bf16.mxu0 0
      %1024 = vmatpush1.bf16.msra.mxu0 0
      %1025 = vmatprep.subr.bf16.mxu0 0
      %1026 = vmatpush1.bf16.msra.mxu0 0
      %1027 = vmatprep.subr.bf16.mxu0 0
      %1028 = vmatpush1.bf16.msra.mxu0 0
      %1029 = vmatprep.subr.bf16.mxu0 0
      %1030 = vmatpush1.bf16.msra.mxu0 0
      %1031 = vmatprep.subr.bf16.mxu0 0
      %1032 = vmatpush1.bf16.msra.mxu0 0
      %1033 = vmatprep.subr.bf16.mxu0 0
      %1034 = vmatpush1.bf16.msra.mxu0 0
      %1035 = vmatprep.subr.bf16.mxu0 0
      %1036 = vmatpush1.bf16.msra.mxu0 0
      %1037 = vmatprep.subr.bf16.mxu0 0
      %1038 = vmatpush1.bf16.msra.mxu0 0
      %1039 = vmatprep.subr.bf16.mxu0 0
      %1040 = vmatpush1.bf16.msra.mxu0 0
      %1041 = vmatprep.subr.bf16.mxu0 0
      %1042 = vmatpush1.bf16.msra.mxu0 0
      %1043 = vmatprep.subr.bf16.mxu0 0
      %1044 = vmatpush1.bf16.msra.mxu0 0
      %1045 = vmatprep.subr.bf16.mxu0 0
      %1046 = vmatpush1.bf16.msra.mxu0 0
      %1047 = vmatprep.subr.bf16.mxu0 0
      %1048 = vmatpush1.bf16.msra.mxu0 0
      %1049 = vmatprep.mubr.bf16.mxu0 0
      %1050 = vmatmul.mubr.bf16.gmra.mrb[0].mxu0 %v1015
      %v1051 = vpop.f32.mrb[0].mxu0
      %v1052 = vadd.f32 0.0, %v1051
      %v1053 = vpop.f32.mrb[0].mxu0
      %v1054 = vpop.f32.mrb[0].mxu0
      %v1055 = vadd.f32 0.0, %v1054
      %v1056 = vpop.f32.mrb[0].mxu0
      %1057 = vdwg.mxu0
      %1058 = vrot.lane.b32.xlu0 %v931, 120
      %v1059 = vpop.permute.xlu0 %1058
      %1060 = vrot.lane.b32.xlu0 %v931, 88
      %v1061 = vpop.permute.xlu0 %1060
      %v1063 = vsel %vm935, %v1059, 0
      %v1066 = vsel %vm935, %v1061, 0
      %1068 = vmatprep.subr.bf16.mxu0 0
      %1069 = vmatpush1.bf16.xpose.msra.mxu0 %v1066
      %1070 = vmatprep.subr.bf16.mxu0 0
      %1071 = vmatpush1.bf16.xpose.msra.mxu0 0
      %1072 = vmatprep.subr.bf16.mxu0 0
      %1073 = vmatpush1.bf16.xpose.msra.mxu0 0
      %1074 = vmatprep.subr.bf16.mxu0 0
      %1075 = vmatpush1.bf16.xpose.msra.mxu0 0
      %1076 = vmatprep.subr.bf16.mxu0 0
      %1077 = vmatpush1.bf16.xpose.msra.mxu0 0
      %1078 = vmatprep.subr.bf16.mxu0 0
      %1079 = vmatpush1.bf16.xpose.msra.mxu0 0
      %1080 = vmatprep.subr.bf16.mxu0 0
      %1081 = vmatpush1.bf16.xpose.msra.mxu0 0
      %1082 = vmatprep.subr.bf16.mxu0 0
      %1083 = vmatpush1.bf16.xpose.msra.mxu0 0
      %1084 = vmatprep.subr.bf16.mxu0 0
      %1085 = vmatpush1.bf16.xpose.msra.mxu0 0
      %1086 = vmatprep.subr.bf16.mxu0 0
      %1087 = vmatpush1.bf16.xpose.msra.mxu0 0
      %1088 = vmatprep.subr.bf16.mxu0 0
      %1089 = vmatpush1.bf16.xpose.msra.mxu0 0
      %1090 = vmatprep.subr.bf16.mxu0 0
      %1091 = vmatpush1.bf16.xpose.msra.mxu0 0
      %1092 = vmatprep.subr.bf16.mxu0 0
      %1093 = vmatpush1.bf16.xpose.msra.mxu0 0
      %1094 = vmatprep.subr.bf16.mxu0 0
      %1095 = vmatpush1.bf16.xpose.msra.mxu0 0
      %1096 = vmatprep.subr.bf16.mxu0 0
      %1097 = vmatpush1.bf16.xpose.msra.mxu0 0
      %1098 = vmatprep.subr.bf16.mxu0 0
      %1099 = vmatpush1.bf16.xpose.msra.mxu0 0
      %1100 = vmatprep.mubr.bf16.mxu0 0
      %1101 = vmatmul.mubr.bf16.gmra.mrb[0].mxu0 %v1063
      %v1102 = vpop.f32.mrb[0].mxu0
      %v1103 = vadd.f32 0.0, %v1102
      %v1104 = vpop.f32.mrb[0].mxu0
      %v1105 = vpop.f32.mrb[0].mxu0
      %v1106 = vadd.f32 0.0, %v1105
      %v1107 = vpop.f32.mrb[0].mxu0
      %1108 = vdwg.mxu0
      %v1109 = vmul.f32 %v1103, 0.35355338
      %v1110 = vmul.f32 %v1106, 0.35355338
      %v1111 = vsel %vm929, %v1109, -1e+30
      %v1112 = vsel %vm930, %v1110, -1e+30
      %v1113 = vsel %vm987, %v1111, -inf
      %1114 = vmax.xlane.f32.xlu0 %v1113
      %v1115 = vpop.xlane.xlu0 %1114
      %v1116 = vsel %vm987, %v1112, -inf
      %1117 = vmax.xlane.f32.xlu0 %v1116
      %v1118 = vpop.xlane.xlu0 %1117
      %v1119 = vsub.f32 %v1111, %v1115
      %v1120 = vsub.f32 %v1112, %v1118
      %v1121 = vmul.f32 %v1119, 1.442695
      %v1122 = vpow.pop %v1121
      %v1123 = vmul.f32 %v1120, 1.442695
      %v1124 = vpow.pop %v1123
      %v1125 = vsel %vm987, %v1122, 0.0
      %1126 = vadd.xlane.f32.xlu0 %v1125
      %v1127 = vpop.xlane.xlu0 %1126
      %v1128 = vsel %vm987, %v1124, 0.0
      %1129 = vadd.xlane.f32.xlu0 %v1128
      %v1130 = vpop.xlane.xlu0 %1129
      %v1131 = vrcp.pop %v1127
      %v1132 = vmul.f32 %v1122, %v1131
      %v1133 = vrcp.pop %v1130
      %v1134 = vmul.f32 %v1124, %v1133
      %v1135 = vpack.c.bf16 %v1134, %v1132
      %1136 = vrot.lane.b32.xlu0 %v931, 56
      %v1137 = vpop.permute.xlu0 %1136
      %v1140 = vsel %vm987, %v1135, 0
      %1142 = vmatprep.subr.bf16.mxu0 0
      %1143 = vmatpush1.bf16.msra.mxu0 %v1137
      %1144 = vmatprep.subr.bf16.mxu0 0
      %1145 = vmatpush1.bf16.msra.mxu0 0
      %1146 = vmatprep.subr.bf16.mxu0 0
      %1147 = vmatpush1.bf16.msra.mxu0 0
      %1148 = vmatprep.subr.bf16.mxu0 0
      %1149 = vmatpush1.bf16.msra.mxu0 0
      %1150 = vmatprep.subr.bf16.mxu0 0
      %1151 = vmatpush1.bf16.msra.mxu0 0
      %1152 = vmatprep.subr.bf16.mxu0 0
      %1153 = vmatpush1.bf16.msra.mxu0 0
      %1154 = vmatprep.subr.bf16.mxu0 0
      %1155 = vmatpush1.bf16.msra.mxu0 0
      %1156 = vmatprep.subr.bf16.mxu0 0
      %1157 = vmatpush1.bf16.msra.mxu0 0
      %1158 = vmatprep.subr.bf16.mxu0 0
      %1159 = vmatpush1.bf16.msra.mxu0 0
      %1160 = vmatprep.subr.bf16.mxu0 0
      %1161 = vmatpush1.bf16.msra.mxu0 0
      %1162 = vmatprep.subr.bf16.mxu0 0
      %1163 = vmatpush1.bf16.msra.mxu0 0
      %1164 = vmatprep.subr.bf16.mxu0 0
      %1165 = vmatpush1.bf16.msra.mxu0 0
      %1166 = vmatprep.subr.bf16.mxu0 0
      %1167 = vmatpush1.bf16.msra.mxu0 0
      %1168 = vmatprep.subr.bf16.mxu0 0
      %1169 = vmatpush1.bf16.msra.mxu0 0
      %1170 = vmatprep.subr.bf16.mxu0 0
      %1171 = vmatpush1.bf16.msra.mxu0 0
      %1172 = vmatprep.subr.bf16.mxu0 0
      %1173 = vmatpush1.bf16.msra.mxu0 0
      %1174 = vmatprep.mubr.bf16.mxu0 0
      %1175 = vmatmul.mubr.bf16.gmra.mrb[0].mxu0 %v1140
      %v1176 = vpop.f32.mrb[0].mxu0
      %v1177 = vadd.f32 0.0, %v1176
      %v1178 = vpop.f32.mrb[0].mxu0
      %v1179 = vpop.f32.mrb[0].mxu0
      %v1180 = vadd.f32 0.0, %v1179
      %v1181 = vpop.f32.mrb[0].mxu0
      %1182 = vdwg.mxu0
      %1183 = vrot.lane.b32.xlu0 %v931, 112
      %v1184 = vpop.permute.xlu0 %1183
      %1185 = vrot.lane.b32.xlu0 %v931, 80
      %v1186 = vpop.permute.xlu0 %1185
      %v1188 = vsel %vm935, %v1184, 0
      %v1191 = vsel %vm935, %v1186, 0
      %1193 = vmatprep.subr.bf16.mxu0 0
      %1194 = vmatpush1.bf16.xpose.msra.mxu0 %v1191
      %1195 = vmatprep.subr.bf16.mxu0 0
      %1196 = vmatpush1.bf16.xpose.msra.mxu0 0
      %1197 = vmatprep.subr.bf16.mxu0 0
      %1198 = vmatpush1.bf16.xpose.msra.mxu0 0
      %1199 = vmatprep.subr.bf16.mxu0 0
      %1200 = vmatpush1.bf16.xpose.msra.mxu0 0
      %1201 = vmatprep.subr.bf16.mxu0 0
      %1202 = vmatpush1.bf16.xpose.msra.mxu0 0
      %1203 = vmatprep.subr.bf16.mxu0 0
      %1204 = vmatpush1.bf16.xpose.msra.mxu0 0
      %1205 = vmatprep.subr.bf16.mxu0 0
      %1206 = vmatpush1.bf16.xpose.msra.mxu0 0
      %1207 = vmatprep.subr.bf16.mxu0 0
      %1208 = vmatpush1.bf16.xpose.msra.mxu0 0
      %1209 = vmatprep.subr.bf16.mxu0 0
      %1210 = vmatpush1.bf16.xpose.msra.mxu0 0
      %1211 = vmatprep.subr.bf16.mxu0 0
      %1212 = vmatpush1.bf16.xpose.msra.mxu0 0
      %1213 = vmatprep.subr.bf16.mxu0 0
      %1214 = vmatpush1.bf16.xpose.msra.mxu0 0
      %1215 = vmatprep.subr.bf16.mxu0 0
      %1216 = vmatpush1.bf16.xpose.msra.mxu0 0
      %1217 = vmatprep.subr.bf16.mxu0 0
      %1218 = vmatpush1.bf16.xpose.msra.mxu0 0
      %1219 = vmatprep.subr.bf16.mxu0 0
      %1220 = vmatpush1.bf16.xpose.msra.mxu0 0
      %1221 = vmatprep.subr.bf16.mxu0 0
      %1222 = vmatpush1.bf16.xpose.msra.mxu0 0
      %1223 = vmatprep.subr.bf16.mxu0 0
      %1224 = vmatpush1.bf16.xpose.msra.mxu0 0
      %1225 = vmatprep.mubr.bf16.mxu0 0
      %1226 = vmatmul.mubr.bf16.gmra.mrb[0].mxu0 %v1188
      %v1227 = vpop.f32.mrb[0].mxu0
      %v1228 = vadd.f32 0.0, %v1227
      %v1229 = vpop.f32.mrb[0].mxu0
      %v1230 = vpop.f32.mrb[0].mxu0
      %v1231 = vadd.f32 0.0, %v1230
      %v1232 = vpop.f32.mrb[0].mxu0
      %1233 = vdwg.mxu0
      %v1234 = vmul.f32 %v1228, 0.35355338
      %v1235 = vmul.f32 %v1231, 0.35355338
      %v1236 = vsel %vm929, %v1234, -1e+30
      %v1237 = vsel %vm930, %v1235, -1e+30
      %v1238 = vsel %vm987, %v1236, -inf
      %1239 = vmax.xlane.f32.xlu0 %v1238
      %v1240 = vpop.xlane.xlu0 %1239
      %v1241 = vsel %vm987, %v1237, -inf
      %1242 = vmax.xlane.f32.xlu0 %v1241
      %v1243 = vpop.xlane.xlu0 %1242
      %v1244 = vsub.f32 %v1236, %v1240
      %v1245 = vsub.f32 %v1237, %v1243
      %v1246 = vmul.f32 %v1244, 1.442695
      %v1247 = vpow.pop %v1246
      %v1248 = vmul.f32 %v1245, 1.442695
      %v1249 = vpow.pop %v1248
      %v1250 = vsel %vm987, %v1247, 0.0
      %1251 = vadd.xlane.f32.xlu0 %v1250
      %v1252 = vpop.xlane.xlu0 %1251
      %v1253 = vsel %vm987, %v1249, 0.0
      %1254 = vadd.xlane.f32.xlu0 %v1253
      %v1255 = vpop.xlane.xlu0 %1254
      %v1256 = vrcp.pop %v1252
      %v1257 = vmul.f32 %v1247, %v1256
      %v1258 = vrcp.pop %v1255
      %v1259 = vmul.f32 %v1249, %v1258
      %v1260 = vpack.c.bf16 %v1259, %v1257
      %1261 = vrot.lane.b32.xlu0 %v931, 48
      %v1262 = vpop.permute.xlu0 %1261
      %v1265 = vsel %vm987, %v1260, 0
      %1267 = vmatprep.subr.bf16.mxu0 0
      %1268 = vmatpush1.bf16.msra.mxu0 %v1262
      %1269 = vmatprep.subr.bf16.mxu0 0
      %1270 = vmatpush1.bf16.msra.mxu0 0
      %1271 = vmatprep.subr.bf16.mxu0 0
      %1272 = vmatpush1.bf16.msra.mxu0 0
      %1273 = vmatprep.subr.bf16.mxu0 0
      %1274 = vmatpush1.bf16.msra.mxu0 0
      %1275 = vmatprep.subr.bf16.mxu0 0
      %1276 = vmatpush1.bf16.msra.mxu0 0
      %1277 = vmatprep.subr.bf16.mxu0 0
      %1278 = vmatpush1.bf16.msra.mxu0 0
      %1279 = vmatprep.subr.bf16.mxu0 0
      %1280 = vmatpush1.bf16.msra.mxu0 0
      %1281 = vmatprep.subr.bf16.mxu0 0
      %1282 = vmatpush1.bf16.msra.mxu0 0
      %1283 = vmatprep.subr.bf16.mxu0 0
      %1284 = vmatpush1.bf16.msra.mxu0 0
      %1285 = vmatprep.subr.bf16.mxu0 0
      %1286 = vmatpush1.bf16.msra.mxu0 0
      %1287 = vmatprep.subr.bf16.mxu0 0
      %1288 = vmatpush1.bf16.msra.mxu0 0
      %1289 = vmatprep.subr.bf16.mxu0 0
      %1290 = vmatpush1.bf16.msra.mxu0 0
      %1291 = vmatprep.subr.bf16.mxu0 0
      %1292 = vmatpush1.bf16.msra.mxu0 0
      %1293 = vmatprep.subr.bf16.mxu0 0
      %1294 = vmatpush1.bf16.msra.mxu0 0
      %1295 = vmatprep.subr.bf16.mxu0 0
      %1296 = vmatpush1.bf16.msra.mxu0 0
      %1297 = vmatprep.subr.bf16.mxu0 0
      %1298 = vmatpush1.bf16.msra.mxu0 0
      %1299 = vmatprep.mubr.bf16.mxu0 0
      %1300 = vmatmul.mubr.bf16.gmra.mrb[0].mxu0 %v1265
      %v1301 = vpop.f32.mrb[0].mxu0
      %v1302 = vadd.f32 0.0, %v1301
      %v1303 = vpop.f32.mrb[0].mxu0
      %v1304 = vpop.f32.mrb[0].mxu0
      %v1305 = vadd.f32 0.0, %v1304
      %v1306 = vpop.f32.mrb[0].mxu0
      %1307 = vdwg.mxu0
      %1308 = vrot.lane.b32.xlu0 %v931, 104
      %v1309 = vpop.permute.xlu0 %1308
      %1310 = vrot.lane.b32.xlu0 %v931, 72
      %v1311 = vpop.permute.xlu0 %1310
      %v1313 = vsel %vm935, %v1309, 0
      %v1316 = vsel %vm935, %v1311, 0
      %1318 = vmatprep.subr.bf16.mxu0 0
      %1319 = vmatpush1.bf16.xpose.msra.mxu0 %v1316
      %1320 = vmatprep.subr.bf16.mxu0 0
      %1321 = vmatpush1.bf16.xpose.msra.mxu0 0
      %1322 = vmatprep.subr.bf16.mxu0 0
      %1323 = vmatpush1.bf16.xpose.msra.mxu0 0
      %1324 = vmatprep.subr.bf16.mxu0 0
      %1325 = vmatpush1.bf16.xpose.msra.mxu0 0
      %1326 = vmatprep.subr.bf16.mxu0 0
      %1327 = vmatpush1.bf16.xpose.msra.mxu0 0
      %1328 = vmatprep.subr.bf16.mxu0 0
      %1329 = vmatpush1.bf16.xpose.msra.mxu0 0
      %1330 = vmatprep.subr.bf16.mxu0 0
      %1331 = vmatpush1.bf16.xpose.msra.mxu0 0
      %1332 = vmatprep.subr.bf16.mxu0 0
      %1333 = vmatpush1.bf16.xpose.msra.mxu0 0
      %1334 = vmatprep.subr.bf16.mxu0 0
      %1335 = vmatpush1.bf16.xpose.msra.mxu0 0
      %1336 = vmatprep.subr.bf16.mxu0 0
      %1337 = vmatpush1.bf16.xpose.msra.mxu0 0
      %1338 = vmatprep.subr.bf16.mxu0 0
      %1339 = vmatpush1.bf16.xpose.msra.mxu0 0
      %1340 = vmatprep.subr.bf16.mxu0 0
      %1341 = vmatpush1.bf16.xpose.msra.mxu0 0
      %1342 = vmatprep.subr.bf16.mxu0 0
      %1343 = vmatpush1.bf16.xpose.msra.mxu0 0
      %1344 = vmatprep.subr.bf16.mxu0 0
      %1345 = vmatpush1.bf16.xpose.msra.mxu0 0
      %1346 = vmatprep.subr.bf16.mxu0 0
      %1347 = vmatpush1.bf16.xpose.msra.mxu0 0
      %1348 = vmatprep.subr.bf16.mxu0 0
      %1349 = vmatpush1.bf16.xpose.msra.mxu0 0
      %1350 = vmatprep.mubr.bf16.mxu0 0
      %1351 = vmatmul.mubr.bf16.gmra.mrb[0].mxu0 %v1313
      %v1352 = vpop.f32.mrb[0].mxu0
      %v1353 = vadd.f32 0.0, %v1352
      %v1354 = vpop.f32.mrb[0].mxu0
      %v1355 = vpop.f32.mrb[0].mxu0
      %v1356 = vadd.f32 0.0, %v1355
      %v1357 = vpop.f32.mrb[0].mxu0
      %1358 = vdwg.mxu0
      %v1359 = vmul.f32 %v1353, 0.35355338
      %v1360 = vmul.f32 %v1356, 0.35355338
      %v1361 = vsel %vm929, %v1359, -1e+30
      %v1362 = vsel %vm930, %v1360, -1e+30
      %v1363 = vsel %vm987, %v1361, -inf
      %1364 = vmax.xlane.f32.xlu0 %v1363
      %v1365 = vpop.xlane.xlu0 %1364
      %v1366 = vsel %vm987, %v1362, -inf
      %1367 = vmax.xlane.f32.xlu0 %v1366
      %v1368 = vpop.xlane.xlu0 %1367
      %v1369 = vsub.f32 %v1361, %v1365
      %v1370 = vsub.f32 %v1362, %v1368
      %v1371 = vmul.f32 %v1369, 1.442695
      %v1372 = vpow.pop %v1371
      %v1373 = vmul.f32 %v1370, 1.442695
      %v1374 = vpow.pop %v1373
      %v1375 = vsel %vm987, %v1372, 0.0
      %1376 = vadd.xlane.f32.xlu0 %v1375
      %v1377 = vpop.xlane.xlu0 %1376
      %v1378 = vsel %vm987, %v1374, 0.0
      %1379 = vadd.xlane.f32.xlu0 %v1378
      %v1380 = vpop.xlane.xlu0 %1379
      %v1381 = vrcp.pop %v1377
      %v1382 = vmul.f32 %v1372, %v1381
      %v1383 = vrcp.pop %v1380
      %v1384 = vmul.f32 %v1374, %v1383
      %v1385 = vpack.c.bf16 %v1384, %v1382
      %1386 = vrot.lane.b32.xlu0 %v931, 40
      %v1387 = vpop.permute.xlu0 %1386
      %v1390 = vsel %vm987, %v1385, 0
      %1392 = vmatprep.subr.bf16.mxu0 0
      %1393 = vmatpush1.bf16.msra.mxu0 %v1387
      %1394 = vmatprep.subr.bf16.mxu0 0
      %1395 = vmatpush1.bf16.msra.mxu0 0
      %1396 = vmatprep.subr.bf16.mxu0 0
      %1397 = vmatpush1.bf16.msra.mxu0 0
      %1398 = vmatprep.subr.bf16.mxu0 0
      %1399 = vmatpush1.bf16.msra.mxu0 0
      %1400 = vmatprep.subr.bf16.mxu0 0
      %1401 = vmatpush1.bf16.msra.mxu0 0
      %1402 = vmatprep.subr.bf16.mxu0 0
      %1403 = vmatpush1.bf16.msra.mxu0 0
      %1404 = vmatprep.subr.bf16.mxu0 0
      %1405 = vmatpush1.bf16.msra.mxu0 0
      %1406 = vmatprep.subr.bf16.mxu0 0
      %1407 = vmatpush1.bf16.msra.mxu0 0
      %1408 = vmatprep.subr.bf16.mxu0 0
      %1409 = vmatpush1.bf16.msra.mxu0 0
      %1410 = vmatprep.subr.bf16.mxu0 0
      %1411 = vmatpush1.bf16.msra.mxu0 0
      %1412 = vmatprep.subr.bf16.mxu0 0
      %1413 = vmatpush1.bf16.msra.mxu0 0
      %1414 = vmatprep.subr.bf16.mxu0 0
      %1415 = vmatpush1.bf16.msra.mxu0 0
      %1416 = vmatprep.subr.bf16.mxu0 0
      %1417 = vmatpush1.bf16.msra.mxu0 0
      %1418 = vmatprep.subr.bf16.mxu0 0
      %1419 = vmatpush1.bf16.msra.mxu0 0
      %1420 = vmatprep.subr.bf16.mxu0 0
      %1421 = vmatpush1.bf16.msra.mxu0 0
      %1422 = vmatprep.subr.bf16.mxu0 0
      %1423 = vmatpush1.bf16.msra.mxu0 0
      %1424 = vmatprep.mubr.bf16.mxu0 0
      %1425 = vmatmul.mubr.bf16.gmra.mrb[0].mxu0 %v1390
      %v1426 = vpop.f32.mrb[0].mxu0
      %v1427 = vadd.f32 0.0, %v1426
      %v1428 = vpop.f32.mrb[0].mxu0
      %v1429 = vpop.f32.mrb[0].mxu0
      %v1430 = vadd.f32 0.0, %v1429
      %v1431 = vpop.f32.mrb[0].mxu0
      %1432 = vdwg.mxu0
      %1435 = vrot.lane.b32.xlu0 %v1177, 8
      %v1436 = vpop.permute.xlu0 %1435
      %1437 = vrot.lane.b32.xlu0 %v1180, 8
      %v1438 = vpop.permute.xlu0 %1437
      %1443 = vrot.lane.b32.xlu0 %v1302, 16
      %v1444 = vpop.permute.xlu0 %1443
      %1445 = vrot.lane.b32.xlu0 %v1305, 16
      %v1446 = vpop.permute.xlu0 %1445
      %1451 = vrot.lane.b32.xlu0 %v1427, 24
      %v1452 = vpop.permute.xlu0 %1451
      %1453 = vrot.lane.b32.xlu0 %v1430, 24
      %v1454 = vpop.permute.xlu0 %1453
      %v1457 = vsel %vm935, %v1052, %v1436
      %v1458 = vsel %vm935, %v1055, %v1438
      %v1459 = vsel %vm987, %v1457, %v1444
      %v1460 = vsel %vm987, %v1458, %v1446
      %vm1461 = vcmask 195584
      %v1462 = vsel %vm1461, %v1459, %v1452
      %v1463 = vsel %vm1461, %v1460, %v1454
      %v1464 = vpack.c.bf16 %v1463, %v1462
      %v1465 = vld [vmem:[%s695] sm:$0xf]
      %v1466 = vld [vmem:[%s695 + $0x4] sm:$0xf]
      %v1467 = vld [vmem:[%s695 + $0x8] sm:$0xf]
      %v1468 = vld [vmem:[%s695 + $0xc] sm:$0xf]
      %v1473 = vunpack.c.l.b16 %v1465
      %v1474 = vunpack.c.l.b16 %v1466
      %v1475 = vunpack.c.l.b16 %v1467
      %v1476 = vunpack.c.l.b16 %v1468
      %v1477 = vpack.c.b16 %v1474, %v1473
      %v1478 = vpack.c.b16 %v1476, %v1475
      %v1482 = vsel %vm812, %v1464, 0
      %1484 = vmatprep.subr.bf16.mxu0 0
      %1485 = vmatpush1.bf16.msra.mxu0 %v1477
      %1486 = vmatprep.subr.bf16.mxu0 0
      %1487 = vmatpush1.bf16.msra.mxu0 %v1478
      %1488 = vmatprep.subr.bf16.mxu0 0
      %1489 = vmatpush1.bf16.msra.mxu0 0
      %1490 = vmatprep.subr.bf16.mxu0 0
      %1491 = vmatpush1.bf16.msra.mxu0 0
      %1492 = vmatprep.subr.bf16.mxu0 0
      %1493 = vmatpush1.bf16.msra.mxu0 0
      %1494 = vmatprep.subr.bf16.mxu0 0
      %1495 = vmatpush1.bf16.msra.mxu0 0
      %1496 = vmatprep.subr.bf16.mxu0 0
      %1497 = vmatpush1.bf16.msra.mxu0 0
      %1498 = vmatprep.subr.bf16.mxu0 0
      %1499 = vmatpush1.bf16.msra.mxu0 0
      %1500 = vmatprep.subr.bf16.mxu0 0
      %1501 = vmatpush1.bf16.msra.mxu0 0
      %1502 = vmatprep.subr.bf16.mxu0 0
      %1503 = vmatpush1.bf16.msra.mxu0 0
      %1504 = vmatprep.subr.bf16.mxu0 0
      %1505 = vmatpush1.bf16.msra.mxu0 0
      %1506 = vmatprep.subr.bf16.mxu0 0
      %1507 = vmatpush1.bf16.msra.mxu0 0
      %1508 = vmatprep.subr.bf16.mxu0 0
      %1509 = vmatpush1.bf16.msra.mxu0 0
      %1510 = vmatprep.subr.bf16.mxu0 0
      %1511 = vmatpush1.bf16.msra.mxu0 0
      %1512 = vmatprep.subr.bf16.mxu0 0
      %1513 = vmatpush1.bf16.msra.mxu0 0
      %1514 = vmatprep.subr.bf16.mxu0 0
      %1515 = vmatpush1.bf16.msra.mxu0 0
      %1516 = vmatprep.mubr.bf16.mxu0 0
      %1517 = vmatmul.mubr.bf16.gmra.mrb[0].mxu0 %v1482
      %v1518 = vpop.f32.mrb[0].mxu0
      %v1519 = vadd.f32 0.0, %v1518
      %v1520 = vpop.f32.mrb[0].mxu0
      %v1521 = vpop.f32.mrb[0].mxu0
      %v1522 = vadd.f32 0.0, %v1521
      %v1523 = vpop.f32.mrb[0].mxu0
      %1524 = vdwg.mxu0
      %v1525 = vadd.f32 %v808, %v1519
      %v1526 = vadd.f32 %v809, %v1522
      %v1527 = vld [vmem:[%s698] sm:$0x1]
      %v1529 = vlaneseq
      %v1530 = vshrl.u32 %v1529, 7
      %v1531 = vsub.s32 0, %v1530
      %v1532 = vrot.slane %v1527, %v1531
      %v1534 = vadd.f32 %v1525, %v1532
      %v1535 = vadd.f32 %v1526, %v1532
      %v1536 = vld [vmem:[%s701] sm:$0x1]
      %v1537 = vld [vmem:[%s704] sm:$0x1]
      %v1538 = vsel %vm812, %v1534, 0.0
      %1539 = vadd.xlane.f32.xlu0 %v1538
      %v1540 = vpop.xlane.xlu0 %1539
      %v1541 = vsel %vm812, %v1535, 0.0
      %1542 = vadd.xlane.f32.xlu0 %v1541
      %v1543 = vpop.xlane.xlu0 %1542
      %v1544 = vmul.f32 %v1540, %v819
      %v1545 = vmul.f32 %v1543, %v819
      %v1546 = vsub.f32 %v1534, %v1544
      %v1547 = vsub.f32 %v1535, %v1545
      %v1548 = vmul.f32 %v1546, %v1546
      %v1549 = vmul.f32 %v1547, %v1547
      %v1550 = vsel %vm812, %v1548, 0.0
      %1551 = vadd.xlane.f32.xlu0 %v1550
      %v1552 = vpop.xlane.xlu0 %1551
      %v1553 = vsel %vm812, %v1549, 0.0
      %1554 = vadd.xlane.f32.xlu0 %v1553
      %v1555 = vpop.xlane.xlu0 %1554
      %v1556 = vmul.f32 %v1552, %v819
      %v1557 = vmul.f32 %v1555, %v819
      %v1558 = vadd.f32 %v1556, 1e-05
      %v1559 = vadd.f32 %v1557, 1e-05
      %v1560 = vrsqrt.pop %v1558
      %v1561 = vrsqrt.pop %v1559
      %v1562 = vmul.f32 %v1546, %v1560
      %v1563 = vmul.f32 %v1547, %v1561
      %v1565 = vlaneseq
      %v1566 = vshrl.u32 %v1565, 7
      %v1567 = vsub.s32 0, %v1566
      %v1568 = vrot.slane %v1536, %v1567
      %v1570 = vmul.f32 %v1562, %v1568
      %v1571 = vmul.f32 %v1563, %v1568
      %v1573 = vlaneseq
      %v1574 = vshrl.u32 %v1573, 7
      %v1575 = vsub.s32 0, %v1574
      %v1576 = vrot.slane %v1537, %v1575
      %v1578 = vadd.f32 %v1570, %v1576
      %v1579 = vadd.f32 %v1571, %v1576
      %v1580 = vpack.c.bf16 %v1579, %v1578
      %v1581 = vld [vmem:[%s709] sm:$0xf]
      %v1582 = vld [vmem:[%s709 + $0x4] sm:$0xf]
      %v1583 = vld [vmem:[%s709 + $0x8] sm:$0xf]
      %v1584 = vld [vmem:[%s709 + $0xc] sm:$0xf]
      %v1585 = vld [vmem:[%s712] sm:$0x1]
      %v1587 = vlaneseq
      %v1588 = vshrl.u32 %v1587, 7
      %v1589 = vsub.s32 0, %v1588
      %v1590 = vrot.slane %v1585, %v1589
      %v1596 = vunpack.c.l.b16 %v1581
      %v1597 = vunpack.c.l.b16 %v1582
      %v1598 = vunpack.c.l.b16 %v1583
      %v1599 = vunpack.c.l.b16 %v1584
      %v1600 = vpack.c.b16 %v1597, %v1596
      %v1601 = vpack.c.b16 %v1599, %v1598
      %v1605 = vsel %vm812, %v1580, 0
      %1607 = vmatprep.subr.bf16.mxu0 0
      %1608 = vmatpush1.bf16.msra.mxu0 %v1600
      %1609 = vmatprep.subr.bf16.mxu0 0
      %1610 = vmatpush1.bf16.msra.mxu0 %v1601
      %1611 = vmatprep.subr.bf16.mxu0 0
      %1612 = vmatpush1.bf16.msra.mxu0 0
      %1613 = vmatprep.subr.bf16.mxu0 0
      %1614 = vmatpush1.bf16.msra.mxu0 0
      %1615 = vmatprep.subr.bf16.mxu0 0
      %1616 = vmatpush1.bf16.msra.mxu0 0
      %1617 = vmatprep.subr.bf16.mxu0 0
      %1618 = vmatpush1.bf16.msra.mxu0 0
      %1619 = vmatprep.subr.bf16.mxu0 0
      %1620 = vmatpush1.bf16.msra.mxu0 0
      %1621 = vmatprep.subr.bf16.mxu0 0
      %1622 = vmatpush1.bf16.msra.mxu0 0
      %1623 = vmatprep.subr.bf16.mxu0 0
      %1624 = vmatpush1.bf16.msra.mxu0 0
      %1625 = vmatprep.subr.bf16.mxu0 0
      %1626 = vmatpush1.bf16.msra.mxu0 0
      %1627 = vmatprep.subr.bf16.mxu0 0
      %1628 = vmatpush1.bf16.msra.mxu0 0
      %1629 = vmatprep.subr.bf16.mxu0 0
      %1630 = vmatpush1.bf16.msra.mxu0 0
      %1631 = vmatprep.subr.bf16.mxu0 0
      %1632 = vmatpush1.bf16.msra.mxu0 0
      %1633 = vmatprep.subr.bf16.mxu0 0
      %1634 = vmatpush1.bf16.msra.mxu0 0
      %1635 = vmatprep.subr.bf16.mxu0 0
      %1636 = vmatpush1.bf16.msra.mxu0 0
      %1637 = vmatprep.subr.bf16.mxu0 0
      %1638 = vmatpush1.bf16.msra.mxu0 0
      %1639 = vmatprep.mubr.bf16.mxu0 0
      %1640 = vmatmul.mubr.bf16.gmra.mrb[0].mxu0 %v1605
      %v1641 = vpop.f32.mrb[0].mxu0
      %v1642 = vadd.f32 %v1590, %v1641
      %v1643 = vpop.f32.mrb[0].mxu0
      %v1644 = vpop.f32.mrb[0].mxu0
      %v1645 = vadd.f32 %v1590, %v1644
      %v1646 = vpop.f32.mrb[0].mxu0
      %1647 = vdwg.mxu0
      %v1648 = vmul.f32 %v1642, %v1642
      %v1649 = vmul.f32 %v1645, %v1645
      %v1650 = vmul.f32 %v1642, %v1648
      %v1651 = vmul.f32 %v1645, %v1649
      %v1652 = vmul.f32 %v1650, 0.044715
      %v1653 = vmul.f32 %v1651, 0.044715
      %v1654 = vadd.f32 %v1642, %v1652
      %v1655 = vadd.f32 %v1645, %v1653
      %v1656 = vmul.f32 %v1654, 0.7978846
      %v1657 = vmul.f32 %v1655, 0.7978846
      %v1658 = vtanh.pop %v1656
      %v1659 = vtanh.pop %v1657
      %v1660 = vadd.f32 %v1658, 1.0
      %v1661 = vadd.f32 %v1659, 1.0
      %v1662 = vmul.f32 %v1660, 0.5
      %v1663 = vmul.f32 %v1661, 0.5
      %v1664 = vmul.f32 %v1642, %v1662
      %v1665 = vmul.f32 %v1645, %v1663
      %v1666 = vpack.c.bf16 %v1665, %v1664
      %v1667 = vld [vmem:[%s717] sm:$0xf]
      %v1668 = vld [vmem:[%s717 + $0x4] sm:$0xf]
      %v1669 = vld [vmem:[%s717 + $0x8] sm:$0xf]
      %v1670 = vld [vmem:[%s717 + $0xc] sm:$0xf]
      %v1671 = vld [vmem:[%s717 + $0x10] sm:$0xf]
      %v1672 = vld [vmem:[%s717 + $0x14] sm:$0xf]
      %v1673 = vld [vmem:[%s717 + $0x18] sm:$0xf]
      %v1674 = vld [vmem:[%s717 + $0x1c] sm:$0xf]
      %v1675 = vld [vmem:[%s717 + $0x20] sm:$0xf]
      %v1676 = vld [vmem:[%s717 + $0x24] sm:$0xf]
      %v1677 = vld [vmem:[%s717 + $0x28] sm:$0xf]
      %v1678 = vld [vmem:[%s717 + $0x2c] sm:$0xf]
      %v1679 = vld [vmem:[%s717 + $0x30] sm:$0xf]
      %v1680 = vld [vmem:[%s717 + $0x34] sm:$0xf]
      %v1681 = vld [vmem:[%s717 + $0x38] sm:$0xf]
      %v1682 = vld [vmem:[%s717 + $0x3c] sm:$0xf]
      %v1683 = vld [vmem:[%s720] sm:$0x1]
      %v1685 = vlaneseq
      %v1686 = vshrl.u32 %v1685, 7
      %v1687 = vsub.s32 0, %v1686
      %v1688 = vrot.slane %v1683, %v1687
      %v1706 = vunpack.c.l.b16 %v1667
      %v1707 = vunpack.c.l.b16 %v1668
      %v1708 = vunpack.c.l.b16 %v1669
      %v1709 = vunpack.c.l.b16 %v1670
      %v1710 = vunpack.c.l.b16 %v1671
      %v1711 = vunpack.c.l.b16 %v1672
      %v1712 = vunpack.c.l.b16 %v1673
      %v1713 = vunpack.c.l.b16 %v1674
      %v1714 = vunpack.c.l.b16 %v1675
      %v1715 = vunpack.c.l.b16 %v1676
      %v1716 = vunpack.c.l.b16 %v1677
      %v1717 = vunpack.c.l.b16 %v1678
      %v1718 = vunpack.c.l.b16 %v1679
      %v1719 = vunpack.c.l.b16 %v1680
      %v1720 = vunpack.c.l.b16 %v1681
      %v1721 = vunpack.c.l.b16 %v1682
      %v1722 = vpack.c.b16 %v1707, %v1706
      %v1723 = vpack.c.b16 %v1709, %v1708
      %v1724 = vpack.c.b16 %v1711, %v1710
      %v1725 = vpack.c.b16 %v1713, %v1712
      %v1726 = vpack.c.b16 %v1715, %v1714
      %v1727 = vpack.c.b16 %v1717, %v1716
      %v1728 = vpack.c.b16 %v1719, %v1718
      %v1729 = vpack.c.b16 %v1721, %v1720
      %1738 = vmatprep.subr.bf16.mxu0 0
      %1739 = vmatpush1.bf16.msra.mxu0 %v1722
      %1740 = vmatprep.subr.bf16.mxu0 0
      %1741 = vmatpush1.bf16.msra.mxu0 %v1723
      %1742 = vmatprep.subr.bf16.mxu0 0
      %1743 = vmatpush1.bf16.msra.mxu0 %v1724
      %1744 = vmatprep.subr.bf16.mxu0 0
      %1745 = vmatpush1.bf16.msra.mxu0 %v1725
      %1746 = vmatprep.subr.bf16.mxu0 0
      %1747 = vmatpush1.bf16.msra.mxu0 %v1726
      %1748 = vmatprep.subr.bf16.mxu0 0
      %1749 = vmatpush1.bf16.msra.mxu0 %v1727
      %1750 = vmatprep.subr.bf16.mxu0 0
      %1751 = vmatpush1.bf16.msra.mxu0 %v1728
      %1752 = vmatprep.subr.bf16.mxu0 0
      %1753 = vmatpush1.bf16.msra.mxu0 %v1729
      %1754 = vmatprep.subr.bf16.mxu0 0
      %1755 = vmatpush1.bf16.msra.mxu0 0
      %1756 = vmatprep.subr.bf16.mxu0 0
      %1757 = vmatpush1.bf16.msra.mxu0 0
      %1758 = vmatprep.subr.bf16.mxu0 0
      %1759 = vmatpush1.bf16.msra.mxu0 0
      %1760 = vmatprep.subr.bf16.mxu0 0
      %1761 = vmatpush1.bf16.msra.mxu0 0
      %1762 = vmatprep.subr.bf16.mxu0 0
      %1763 = vmatpush1.bf16.msra.mxu0 0
      %1764 = vmatprep.subr.bf16.mxu0 0
      %1765 = vmatpush1.bf16.msra.mxu0 0
      %1766 = vmatprep.subr.bf16.mxu0 0
      %1767 = vmatpush1.bf16.msra.mxu0 0
      %1768 = vmatprep.subr.bf16.mxu0 0
      %1769 = vmatpush1.bf16.msra.mxu0 0
      %1770 = vmatprep.mubr.bf16.mxu0 0
      %1771 = vmatmul.mubr.bf16.gmra.mrb[0].mxu0 %v1666
      %v1772 = vpop.f32.mrb[0].mxu0
      %v1773 = vadd.f32 %v1688, %v1772
      %v1774 = vpop.f32.mrb[0].mxu0
      %v1775 = vpop.f32.mrb[0].mxu0
      %v1776 = vadd.f32 %v1688, %v1775
      %v1777 = vpop.f32.mrb[0].mxu0
      %1778 = vdwg.mxu0
      %v1779 = vadd.f32 %v1534, %v1773
      %v1780 = vadd.f32 %v1535, %v1776
      %1781 = vst.msk [vmem:[%s725] sm:$0xff] %vm812, %v1779
      %1782 = vst.msk [vmem:[%s725 + $0x8] sm:$0xff] %vm812, %v1780
      %p1783 = scmp.lt.s32.totalorder %s31, 1
      %s1784 = scalar_select %p1783, %s31, 1
      %s1785 = smul.addr %s1784, 2
      %s1786 = smul.addr %s1785, 8
      %s1787 = scalar_lea.vmem %s16, %s1786
      // Predicated region
      $region89: #{actor_forward.2} parent=83 // pred_check
        %p1788 = pneg %p458
      $region90: #{actor_forward.2} parent=83 // pred_check_branch
        %1790 = sbr.rel (%p1788) target = $region92
      $region91: #{actor_forward.2} parent=83 // pred_region
        _
      $region92: #{actor_forward.2} parent=83 // pred_fallthru
        _
    $region84: #{actor_forward.2} parent=5 // pred_fallthru
      _
    %p1791 = scmp.le.s32.totalorder 2, %s22
    // Predicated region
    $region93: #{actor_forward.2} parent=5 // pred_check
      %p1792 = pneg %p1791
    $region94: #{actor_forward.2} parent=5 // pred_check_branch
      %1794 = sbr.rel (%p1792) target = $region96
    $region95: #{actor_forward.2} parent=5 // pred_region
      %s1795 = ssub.s32 %s22, 2
      // Predicated region
      $region97: #{actor_forward.2} parent=95 // pred_check
        %p1796 = pneg %p464
      $region98: #{actor_forward.2} parent=95 // pred_check_branch
        %1798 = sbr.rel (%p1796) target = $region100
      $region99: #{actor_forward.2} parent=95 // pred_region
        %p1799 = scmp.lt.s32.totalorder %s33, 1
        %s1800 = scalar_select %p1799, %s33, 1
        %s1801 = smul.addr %s1800, 2
        %s1802 = smul.addr %s1801, 8
        %s1803 = scalar_lea.vmem %s16, %s1802
      $region100: #{actor_forward.2} parent=95 // pred_fallthru
        _
    $region96: #{actor_forward.2} parent=5 // pred_fallthru
      _
  $region6: #{actor_forward.2} parent=0 // loop_footer
    %s26 = sadd.s32 1, %s22
  $region7: #{actor_forward.2} parent=0 // loop_footer_branch
    %21 = sbr.rel target = $region3
  $region8: #{actor_forward.2} parent=0 // loop_exit
    _

</llo_original>
